<compile_context>
chip_gen: v7x
topology: tpu7x:2x2x1
jax: 0.10.0
libtpu: 0.0.40
codegen_flags: <defaults>
</compile_context>

<pallas_src>
import jax
import jax.numpy as jnp
from jax.experimental import pallas as pl
from jax.experimental.pallas import tpu as pltpu  # noqa: F401  (TPU backend import)

EPS = 1e-3  # BatchNorm2d eps=0.001


def conv_bn_kernel(x_ref, w_ref, gb_ref, o_ref):
    # In-kernel f32 -> bf16 cast for the MXU (no wrapper-side convert pass).
    x = x_ref[...].astype(jnp.bfloat16)          # (Cin, M)
    w = w_ref[...].astype(jnp.bfloat16)          # (Cout, Cin)

    # 1x1 conv as a single MXU matmul in (Cout, M) form, f32 accumulation.
    y = jnp.dot(w, x, preferred_element_type=jnp.float32)   # (Cout, M) f32

    # Single-pass BatchNorm2d (training mode) statistics over M = N*H*W:
    #   mean = sum(y)/M,  var = sum(y*y)/M - mean^2  (biased variance)
    inv_m = jnp.float32(1.0 / y.shape[1])
    s = jnp.sum(y, axis=1, keepdims=True)        # (Cout, 1)
    ss = jnp.sum(y * y, axis=1, keepdims=True)   # (Cout, 1)
    mean = s * inv_m
    var = jnp.maximum(ss * inv_m - mean * mean, 0.0)

    gb = gb_ref[...]                             # (Cout, 2) = [gamma | beta]
    gamma = gb[:, 0:1]
    beta = gb[:, 1:2]
    # rsqrt on the tiny (Cout, 1) tile (EUP); affine folded into scale/bias.
    scale = jax.lax.rsqrt(var + EPS) * gamma     # (Cout, 1)
    bias = beta - mean * scale                   # (Cout, 1)

    # One FMA pass over the full (Cout, M) tile — no `y - mean` temp.
    o_ref[...] = (y * scale + bias).astype(o_ref.dtype)


def conv2d_1x1_batchnorm(x_nchw, w_conv, gamma, beta):
    """x_nchw: (N, Cin, H, W) f32; w_conv: (Cout, Cin, 1, 1); gamma/beta: (Cout,)."""
    n, cin, h, w = x_nchw.shape
    cout = w_conv.shape[0]
    m = n * h * w

    # (Cout, M) formulation: for N == 1 the reshape NCHW -> (Cin, H*W) is free.
    # TODO(synk): for N > 1 fold the channel-major transpose into the kernel
    #             via a grid over N / BlockSpec index_maps instead of jnp.transpose.
    if n == 1:
        x2d = x_nchw.reshape(cin, m)
    else:
        x2d = jnp.transpose(x_nchw, (1, 0, 2, 3)).reshape(cin, m)

    # f32 inputs straight into the kernel; bf16 cast happens in VMEM.
    x2d = x2d.astype(jnp.float32)
    w_mat = w_conv.reshape(cout, cin).astype(jnp.float32)
    # gamma and beta packed into one (Cout, 2) buffer -> one DMA instead of two.
    gb = jnp.stack(
        [gamma.astype(jnp.float32), beta.astype(jnp.float32)], axis=1
    )  # (Cout, 2)

    out2d = pl.pallas_call(
        conv_bn_kernel,
        out_shape=jax.ShapeDtypeStruct((cout, m), jnp.float32),
        in_specs=[
            pl.BlockSpec((cin, m), lambda: (0, 0)),
            pl.BlockSpec((cout, cin), lambda: (0, 0)),
            pl.BlockSpec((cout, 2), lambda: (0, 0)),
        ],
        out_specs=pl.BlockSpec((cout, m), lambda: (0, 0)),
    )(x2d, w_mat, gb)

    if n == 1:
        return out2d.reshape(1, cout, h, w)
    return jnp.transpose(out2d.reshape(cout, n, h, w), (1, 0, 2, 3))


if __name__ == "__main__":
    key = jax.random.PRNGKey(0)
    k_x, k_w, k_g, k_b = jax.random.split(key, 4)

    # Shapes from the module: Conv2d(384 -> 96, 1x1), input (1, 384, 28, 28).
    N, CIN, H, W = 1, 384, 28, 28
    COUT = 96

    x = jax.random.normal(k_x, (N, CIN, H, W), dtype=jnp.float32)
    w_conv = jax.random.normal(k_w, (COUT, CIN, 1, 1), dtype=jnp.float32) * (
        1.0 / jnp.sqrt(CIN)
    )
    gamma = 1.0 + 0.1 * jax.random.normal(k_g, (COUT,), dtype=jnp.float32)
    beta = 0.1 * jax.random.normal(k_b, (COUT,), dtype=jnp.float32)

    out = conv2d_1x1_batchnorm(x, w_conv, gamma, beta)
    jax.block_until_ready(out)

    # Reference on the same bf16-quantized matmul inputs, f32 math throughout.
    xq = x.astype(jnp.bfloat16).astype(jnp.float32)
    wq = w_conv.reshape(COUT, CIN).astype(jnp.bfloat16).astype(jnp.float32)
    y_ref = jnp.einsum(
        "nchw,oc->nohw",
        xq,
        wq,
        preferred_element_type=jnp.float32,
        precision=jax.lax.Precision.HIGHEST,
    )
    mean = jnp.mean(y_ref, axis=(0, 2, 3), keepdims=True)
    var = jnp.mean((y_ref - mean) ** 2, axis=(0, 2, 3), keepdims=True)
    ref = (y_ref - mean) * jax.lax.rsqrt(var + EPS) * gamma.reshape(1, -1, 1, 1) \
        + beta.reshape(1, -1, 1, 1)

    assert out.shape == (N, COUT, H, W)
    err = float(jnp.max(jnp.abs(out - ref)))
    assert err < 1e-2, f"max abs err {err}"

    print("KERNEL_OK")
</pallas_src>

<mosaic_0001>
module attributes {stable_mosaic.version = 11 : i64} {
  func.func @conv_bn_kernel(%arg0: memref<384x784xf32, #tpu.memory_space<vmem>>, %arg1: memref<96x384xf32, #tpu.memory_space<vmem>>, %arg2: memref<96x2xf32, #tpu.memory_space<vmem>>, %arg3: memref<96x784xf32, #tpu.memory_space<vmem>>) attributes {dimension_semantics = [], scalar_prefetch = 0 : i64, scratch_operands = 0 : i64, tpu.core_type = #tpu.core_type<tc>} {
    %c0 = arith.constant 0 : index
    %c0_0 = arith.constant 0 : index
    %0 = vector.load %arg0[%c0, %c0_0] : memref<384x784xf32, #tpu.memory_space<vmem>>, vector<384x784xf32>
    %1 = arith.truncf %0 : vector<384x784xf32> to vector<384x784xbf16>
    %c0_1 = arith.constant 0 : index
    %c0_2 = arith.constant 0 : index
    %2 = vector.load %arg1[%c0_1, %c0_2] : memref<96x384xf32, #tpu.memory_space<vmem>>, vector<96x384xf32>
    %3 = arith.truncf %2 : vector<96x384xf32> to vector<96x384xbf16>
    %cst = arith.constant dense<0.000000e+00> : vector<96x784xf32>
    %4 = tpu.matmul %3, %1, %cst {dimension_numbers = #tpu.dot_dimension_numbers<[1], [0], [0], [1], [0, 0, 1, 1], [], []>} : vector<96x384xbf16>, vector<384x784xbf16>, vector<96x784xf32> -> vector<96x784xf32>
    %cst_3 = arith.constant dense<0.000000e+00> : vector<96xf32>
    %5 = vector.multi_reduction <add>, %4, %cst_3 [1] : vector<96x784xf32> to vector<96xf32>
    %6 = vector.shape_cast %5 : vector<96xf32> to vector<96x1xf32>
    %7 = arith.mulf %4, %4 : vector<96x784xf32>
    %cst_4 = arith.constant dense<0.000000e+00> : vector<96xf32>
    %8 = vector.multi_reduction <add>, %7, %cst_4 [1] : vector<96x784xf32> to vector<96xf32>
    %9 = vector.shape_cast %8 : vector<96xf32> to vector<96x1xf32>
    %cst_5 = arith.constant 0.00127551018 : f32
    %10 = vector.broadcast %cst_5 : f32 to vector<96x1xf32>
    %11 = arith.mulf %6, %10 : vector<96x1xf32>
    %cst_6 = arith.constant 0.00127551018 : f32
    %12 = vector.broadcast %cst_6 : f32 to vector<96x1xf32>
    %13 = arith.mulf %9, %12 : vector<96x1xf32>
    %14 = arith.mulf %11, %11 : vector<96x1xf32>
    %15 = arith.subf %13, %14 : vector<96x1xf32>
    %cst_7 = arith.constant 0.000000e+00 : f32
    %16 = vector.broadcast %cst_7 : f32 to vector<96x1xf32>
    %17 = arith.maximumf %15, %16 : vector<96x1xf32>
    %c0_8 = arith.constant 0 : index
    %c0_9 = arith.constant 0 : index
    %18 = vector.load %arg2[%c0_8, %c0_9] : memref<96x2xf32, #tpu.memory_space<vmem>>, vector<96x2xf32>
    %19 = vector.extract_strided_slice %18 {offsets = [0, 0], sizes = [96, 1], strides = [1, 1]} : vector<96x2xf32> to vector<96x1xf32>
    %20 = vector.extract_strided_slice %18 {offsets = [0, 1], sizes = [96, 1], strides = [1, 1]} : vector<96x2xf32> to vector<96x1xf32>
    %cst_10 = arith.constant 1.000000e-03 : f32
    %21 = vector.broadcast %cst_10 : f32 to vector<96x1xf32>
    %22 = arith.addf %17, %21 : vector<96x1xf32>
    %23 = math.rsqrt %22 : vector<96x1xf32>
    %24 = arith.mulf %23, %19 : vector<96x1xf32>
    %25 = arith.mulf %11, %24 : vector<96x1xf32>
    %26 = arith.subf %20, %25 : vector<96x1xf32>
    %27 = vector.broadcast %24 : vector<96x1xf32> to vector<96x784xf32>
    %28 = arith.mulf %4, %27 : vector<96x784xf32>
    %29 = vector.broadcast %26 : vector<96x1xf32> to vector<96x784xf32>
    %30 = arith.addf %28, %29 : vector<96x784xf32>
    %c0_11 = arith.constant 0 : index
    %c0_12 = arith.constant 0 : index
    %31 = vector.load %arg3[%c0_11, %c0_12] : memref<96x784xf32, #tpu.memory_space<vmem>>, vector<96x784xf32>
    tpu.vector_store %arg3[%c0_11, %c0_12], %30 {strides = array<i32>} : memref<96x784xf32, #tpu.memory_space<vmem>>, vector<96x784xf32>,
    return
  }
}

</mosaic_0001>

<llo_original>
// kernel: tpu_custom_call.1
$region0: #{tpu_custom_call.1}
  #allocation0 [shape = 'u32[]', space=smem, size = 0x4, offset = 0x4, fixed_abs, tag = 'smem constant byte address 0x4 - core index']
  #allocation1 [shape = 'u32[144,128]{1,0:T(1,128)}', space=vmem, size = 0x12000, scoped, tag = 'internal scratch']
  %s0 = inlined_call_operand.vmem [shape: f32[384,784], index: 0, kind: input, shape index: {}]
  %s1 = inlined_call_operand.vmem [shape: f32[96,384], index: 1, kind: input, shape index: {}]
  %s2 = inlined_call_operand.vmem [shape: f32[96,2], index: 2, kind: input, shape index: {}]
  %s3 = inlined_call_operand.hbm [shape: f32[96,784], index: 3, kind: output, shape index: {}]
  %s4 = sld [smem:[#allocation0]]
  $region22: #{tpu_custom_call.1} parent=0
    _
  %s6 = ssub.s32 1, %s4
  %s7 = scalar_select 0, %s6, %s4
  $region1: #{tpu_custom_call.1} parent=0
    #allocation2 [shape = 'u8[344064]{0}', space=vmem, size = 0x54000, scoped, tag = 'output window, operand 0, single buffered']
    #allocation3 [shape = 's32[1]{0}', space=sflag, size = 0x4, scoped, tag = 'scoped memory for tpu_custom_call.1']
    %8 = vsyncpa [#allocation3], 0
    // Predicated region
    $region2: #{tpu_custom_call.1} parent=1 // pred_check
      _
    $region3: #{tpu_custom_call.1} parent=1 // pred_check_branch
      %10 = sbr.rel (0) target = $region5
    $region4: #{tpu_custom_call.1} parent=1 // pred_region
      _
    $region5: #{tpu_custom_call.1} parent=1 // pred_fallthru
      _
    // Predicated region
    $region6: #{tpu_custom_call.1} parent=1 // pred_check
      _
    $region7: #{tpu_custom_call.1} parent=1 // pred_check_branch
      %12 = sbr.rel (0) target = $region9
    $region8: #{tpu_custom_call.1} parent=1 // pred_region
      _
    $region9: #{tpu_custom_call.1} parent=1 // pred_fallthru
      _
    // Predicated region
    $region10: #{tpu_custom_call.1} parent=1 // pred_check
      _
    $region11: #{tpu_custom_call.1} parent=1 // pred_check_branch
      %14 = sbr.rel (0) target = $region13
    $region12: #{tpu_custom_call.1} parent=1 // pred_region
      _
    $region13: #{tpu_custom_call.1} parent=1 // pred_fallthru
      _
    %v16 = vld [vmem:[%s0] sm:$0xff]
    %v17 = vld [vmem:[%s0 + $0x8] sm:$0xff]
    %v18 = vld [vmem:[%s0 + $0x10] sm:$0xff]
    %v19 = vld [vmem:[%s0 + $0x18] sm:$0xff]
    %v20 = vld [vmem:[%s0 + $0x20] sm:$0xff]
    %v21 = vld [vmem:[%s0 + $0x28] sm:$0xff]
    %v22 = vld [vmem:[%s0 + $0x30] sm:$0xff]
    %v23 = vld [vmem:[%s0 + $0x38] sm:$0xff]
    %v24 = vld [vmem:[%s0 + $0x40] sm:$0xff]
    %v25 = vld [vmem:[%s0 + $0x48] sm:$0xff]
    %v26 = vld [vmem:[%s0 + $0x50] sm:$0xff]
    %v27 = vld [vmem:[%s0 + $0x58] sm:$0xff]
    %v28 = vld [vmem:[%s0 + $0x60] sm:$0xff]
    %v29 = vld [vmem:[%s0 + $0x68] sm:$0xff]
    %v30 = vld [vmem:[%s0 + $0x70] sm:$0xff]
    %v31 = vld [vmem:[%s0 + $0x78] sm:$0xff]
    %v32 = vld [vmem:[%s0 + $0x80] sm:$0xff]
    %v33 = vld [vmem:[%s0 + $0x88] sm:$0xff]
    %v34 = vld [vmem:[%s0 + $0x90] sm:$0xff]
    %v35 = vld [vmem:[%s0 + $0x98] sm:$0xff]
    %v36 = vld [vmem:[%s0 + $0xa0] sm:$0xff]
    %v37 = vld [vmem:[%s0 + $0xa8] sm:$0xff]
    %v38 = vld [vmem:[%s0 + $0xb0] sm:$0xff]
    %v39 = vld [vmem:[%s0 + $0xb8] sm:$0xff]
    %v40 = vld [vmem:[%s0 + $0xc0] sm:$0xff]
    %v41 = vld [vmem:[%s0 + $0xc8] sm:$0xff]
    %v42 = vld [vmem:[%s0 + $0xd0] sm:$0xff]
    %v43 = vld [vmem:[%s0 + $0xd8] sm:$0xff]
    %v44 = vld [vmem:[%s0 + $0xe0] sm:$0xff]
    %v45 = vld [vmem:[%s0 + $0xe8] sm:$0xff]
    %v46 = vld [vmem:[%s0 + $0xf0] sm:$0xff]
    %v47 = vld [vmem:[%s0 + $0xf8] sm:$0xff]
    %v48 = vld [vmem:[%s0 + $0x100] sm:$0xff]
    %v49 = vld [vmem:[%s0 + $0x108] sm:$0xff]
    %v50 = vld [vmem:[%s0 + $0x110] sm:$0xff]
    %v51 = vld [vmem:[%s0 + $0x118] sm:$0xff]
    %v52 = vld [vmem:[%s0 + $0x120] sm:$0xff]
    %v53 = vld [vmem:[%s0 + $0x128] sm:$0xff]
    %v54 = vld [vmem:[%s0 + $0x130] sm:$0xff]
    %v55 = vld [vmem:[%s0 + $0x138] sm:$0xff]
    %v56 = vld [vmem:[%s0 + $0x140] sm:$0xff]
    %v57 = vld [vmem:[%s0 + $0x148] sm:$0xff]
    %v58 = vld [vmem:[%s0 + $0x150] sm:$0xff]
    %v59 = vld [vmem:[%s0 + $0x158] sm:$0xff]
    %v60 = vld [vmem:[%s0 + $0x160] sm:$0xff]
    %v61 = vld [vmem:[%s0 + $0x168] sm:$0xff]
    %v62 = vld [vmem:[%s0 + $0x170] sm:$0xff]
    %v63 = vld [vmem:[%s0 + $0x178] sm:$0xff]
    %v64 = vld [vmem:[%s0 + $0x180] sm:$0xff]
    %v65 = vld [vmem:[%s0 + $0x188] sm:$0xff]
    %v66 = vld [vmem:[%s0 + $0x190] sm:$0xff]
    %v67 = vld [vmem:[%s0 + $0x198] sm:$0xff]
    %v68 = vld [vmem:[%s0 + $0x1a0] sm:$0xff]
    %v69 = vld [vmem:[%s0 + $0x1a8] sm:$0xff]
    %v70 = vld [vmem:[%s0 + $0x1b0] sm:$0xff]
    %v71 = vld [vmem:[%s0 + $0x1b8] sm:$0xff]
    %v72 = vld [vmem:[%s0 + $0x1c0] sm:$0xff]
    %v73 = vld [vmem:[%s0 + $0x1c8] sm:$0xff]
    %v74 = vld [vmem:[%s0 + $0x1d0] sm:$0xff]
    %v75 = vld [vmem:[%s0 + $0x1d8] sm:$0xff]
    %v76 = vld [vmem:[%s0 + $0x1e0] sm:$0xff]
    %v77 = vld [vmem:[%s0 + $0x1e8] sm:$0xff]
    %v78 = vld [vmem:[%s0 + $0x1f0] sm:$0xff]
    %v79 = vld [vmem:[%s0 + $0x1f8] sm:$0xff]
    %v80 = vld [vmem:[%s0 + $0x200] sm:$0xff]
    %v81 = vld [vmem:[%s0 + $0x208] sm:$0xff]
    %v82 = vld [vmem:[%s0 + $0x210] sm:$0xff]
    %v83 = vld [vmem:[%s0 + $0x218] sm:$0xff]
    %v84 = vld [vmem:[%s0 + $0x220] sm:$0xff]
    %v85 = vld [vmem:[%s0 + $0x228] sm:$0xff]
    %v86 = vld [vmem:[%s0 + $0x230] sm:$0xff]
    %v87 = vld [vmem:[%s0 + $0x238] sm:$0xff]
    %v88 = vld [vmem:[%s0 + $0x240] sm:$0xff]
    %v89 = vld [vmem:[%s0 + $0x248] sm:$0xff]
    %v90 = vld [vmem:[%s0 + $0x250] sm:$0xff]
    %v91 = vld [vmem:[%s0 + $0x258] sm:$0xff]
    %v92 = vld [vmem:[%s0 + $0x260] sm:$0xff]
    %v93 = vld [vmem:[%s0 + $0x268] sm:$0xff]
    %v94 = vld [vmem:[%s0 + $0x270] sm:$0xff]
    %v95 = vld [vmem:[%s0 + $0x278] sm:$0xff]
    %v96 = vld [vmem:[%s0 + $0x280] sm:$0xff]
    %v97 = vld [vmem:[%s0 + $0x288] sm:$0xff]
    %v98 = vld [vmem:[%s0 + $0x290] sm:$0xff]
    %v99 = vld [vmem:[%s0 + $0x298] sm:$0xff]
    %v100 = vld [vmem:[%s0 + $0x2a0] sm:$0xff]
    %v101 = vld [vmem:[%s0 + $0x2a8] sm:$0xff]
    %v102 = vld [vmem:[%s0 + $0x2b0] sm:$0xff]
    %v103 = vld [vmem:[%s0 + $0x2b8] sm:$0xff]
    %v104 = vld [vmem:[%s0 + $0x2c0] sm:$0xff]
    %v105 = vld [vmem:[%s0 + $0x2c8] sm:$0xff]
    %v106 = vld [vmem:[%s0 + $0x2d0] sm:$0xff]
    %v107 = vld [vmem:[%s0 + $0x2d8] sm:$0xff]
    %v108 = vld [vmem:[%s0 + $0x2e0] sm:$0xff]
    %v109 = vld [vmem:[%s0 + $0x2e8] sm:$0xff]
    %v110 = vld [vmem:[%s0 + $0x2f0] sm:$0xff]
    %v111 = vld [vmem:[%s0 + $0x2f8] sm:$0xff]
    %v112 = vld [vmem:[%s0 + $0x300] sm:$0xff]
    %v113 = vld [vmem:[%s0 + $0x308] sm:$0xff]
    %v114 = vld [vmem:[%s0 + $0x310] sm:$0xff]
    %v115 = vld [vmem:[%s0 + $0x318] sm:$0xff]
    %v116 = vld [vmem:[%s0 + $0x320] sm:$0xff]
    %v117 = vld [vmem:[%s0 + $0x328] sm:$0xff]
    %v118 = vld [vmem:[%s0 + $0x330] sm:$0xff]
    %v119 = vld [vmem:[%s0 + $0x338] sm:$0xff]
    %v120 = vld [vmem:[%s0 + $0x340] sm:$0xff]
    %v121 = vld [vmem:[%s0 + $0x348] sm:$0xff]
    %v122 = vld [vmem:[%s0 + $0x350] sm:$0xff]
    %v123 = vld [vmem:[%s0 + $0x358] sm:$0xff]
    %v124 = vld [vmem:[%s0 + $0x360] sm:$0xff]
    %v125 = vld [vmem:[%s0 + $0x368] sm:$0xff]
    %v126 = vld [vmem:[%s0 + $0x370] sm:$0xff]
    %v127 = vld [vmem:[%s0 + $0x378] sm:$0xff]
    %v128 = vld [vmem:[%s0 + $0x380] sm:$0xff]
    %v129 = vld [vmem:[%s0 + $0x388] sm:$0xff]
    %v130 = vld [vmem:[%s0 + $0x390] sm:$0xff]
    %v131 = vld [vmem:[%s0 + $0x398] sm:$0xff]
    %v132 = vld [vmem:[%s0 + $0x3a0] sm:$0xff]
    %v133 = vld [vmem:[%s0 + $0x3a8] sm:$0xff]
    %v134 = vld [vmem:[%s0 + $0x3b0] sm:$0xff]
    %v135 = vld [vmem:[%s0 + $0x3b8] sm:$0xff]
    %v136 = vld [vmem:[%s0 + $0x3c0] sm:$0xff]
    %v137 = vld [vmem:[%s0 + $0x3c8] sm:$0xff]
    %v138 = vld [vmem:[%s0 + $0x3d0] sm:$0xff]
    %v139 = vld [vmem:[%s0 + $0x3d8] sm:$0xff]
    %v140 = vld [vmem:[%s0 + $0x3e0] sm:$0xff]
    %v141 = vld [vmem:[%s0 + $0x3e8] sm:$0xff]
    %v142 = vld [vmem:[%s0 + $0x3f0] sm:$0xff]
    %v143 = vld [vmem:[%s0 + $0x3f8] sm:$0xff]
    %v144 = vld [vmem:[%s0 + $0x400] sm:$0xff]
    %v145 = vld [vmem:[%s0 + $0x408] sm:$0xff]
    %v146 = vld [vmem:[%s0 + $0x410] sm:$0xff]
    %v147 = vld [vmem:[%s0 + $0x418] sm:$0xff]
    %v148 = vld [vmem:[%s0 + $0x420] sm:$0xff]
    %v149 = vld [vmem:[%s0 + $0x428] sm:$0xff]
    %v150 = vld [vmem:[%s0 + $0x430] sm:$0xff]
    %v151 = vld [vmem:[%s0 + $0x438] sm:$0xff]
    %v152 = vld [vmem:[%s0 + $0x440] sm:$0xff]
    %v153 = vld [vmem:[%s0 + $0x448] sm:$0xff]
    %v154 = vld [vmem:[%s0 + $0x450] sm:$0xff]
    %v155 = vld [vmem:[%s0 + $0x458] sm:$0xff]
    %v156 = vld [vmem:[%s0 + $0x460] sm:$0xff]
    %v157 = vld [vmem:[%s0 + $0x468] sm:$0xff]
    %v158 = vld [vmem:[%s0 + $0x470] sm:$0xff]
    %v159 = vld [vmem:[%s0 + $0x478] sm:$0xff]
    %v160 = vld [vmem:[%s0 + $0x480] sm:$0xff]
    %v161 = vld [vmem:[%s0 + $0x488] sm:$0xff]
    %v162 = vld [vmem:[%s0 + $0x490] sm:$0xff]
    %v163 = vld [vmem:[%s0 + $0x498] sm:$0xff]
    %v164 = vld [vmem:[%s0 + $0x4a0] sm:$0xff]
    %v165 = vld [vmem:[%s0 + $0x4a8] sm:$0xff]
    %v166 = vld [vmem:[%s0 + $0x4b0] sm:$0xff]
    %v167 = vld [vmem:[%s0 + $0x4b8] sm:$0xff]
    %v168 = vld [vmem:[%s0 + $0x4c0] sm:$0xff]
    %v169 = vld [vmem:[%s0 + $0x4c8] sm:$0xff]
    %v170 = vld [vmem:[%s0 + $0x4d0] sm:$0xff]
    %v171 = vld [vmem:[%s0 + $0x4d8] sm:$0xff]
    %v172 = vld [vmem:[%s0 + $0x4e0] sm:$0xff]
    %v173 = vld [vmem:[%s0 + $0x4e8] sm:$0xff]
    %v174 = vld [vmem:[%s0 + $0x4f0] sm:$0xff]
    %v175 = vld [vmem:[%s0 + $0x4f8] sm:$0xff]
    %v176 = vld [vmem:[%s0 + $0x500] sm:$0xff]
    %v177 = vld [vmem:[%s0 + $0x508] sm:$0xff]
    %v178 = vld [vmem:[%s0 + $0x510] sm:$0xff]
    %v179 = vld [vmem:[%s0 + $0x518] sm:$0xff]
    %v180 = vld [vmem:[%s0 + $0x520] sm:$0xff]
    %v181 = vld [vmem:[%s0 + $0x528] sm:$0xff]
    %v182 = vld [vmem:[%s0 + $0x530] sm:$0xff]
    %v183 = vld [vmem:[%s0 + $0x538] sm:$0xff]
    %v184 = vld [vmem:[%s0 + $0x540] sm:$0xff]
    %v185 = vld [vmem:[%s0 + $0x548] sm:$0xff]
    %v186 = vld [vmem:[%s0 + $0x550] sm:$0xff]
    %v187 = vld [vmem:[%s0 + $0x558] sm:$0xff]
    %v188 = vld [vmem:[%s0 + $0x560] sm:$0xff]
    %v189 = vld [vmem:[%s0 + $0x568] sm:$0xff]
    %v190 = vld [vmem:[%s0 + $0x570] sm:$0xff]
    %v191 = vld [vmem:[%s0 + $0x578] sm:$0xff]
    %v192 = vld [vmem:[%s0 + $0x580] sm:$0xff]
    %v193 = vld [vmem:[%s0 + $0x588] sm:$0xff]
    %v194 = vld [vmem:[%s0 + $0x590] sm:$0xff]
    %v195 = vld [vmem:[%s0 + $0x598] sm:$0xff]
    %v196 = vld [vmem:[%s0 + $0x5a0] sm:$0xff]
    %v197 = vld [vmem:[%s0 + $0x5a8] sm:$0xff]
    %v198 = vld [vmem:[%s0 + $0x5b0] sm:$0xff]
    %v199 = vld [vmem:[%s0 + $0x5b8] sm:$0xff]
    %v200 = vld [vmem:[%s0 + $0x5c0] sm:$0xff]
    %v201 = vld [vmem:[%s0 + $0x5c8] sm:$0xff]
    %v202 = vld [vmem:[%s0 + $0x5d0] sm:$0xff]
    %v203 = vld [vmem:[%s0 + $0x5d8] sm:$0xff]
    %v204 = vld [vmem:[%s0 + $0x5e0] sm:$0xff]
    %v205 = vld [vmem:[%s0 + $0x5e8] sm:$0xff]
    %v206 = vld [vmem:[%s0 + $0x5f0] sm:$0xff]
    %v207 = vld [vmem:[%s0 + $0x5f8] sm:$0xff]
    %v208 = vld [vmem:[%s0 + $0x600] sm:$0xff]
    %v209 = vld [vmem:[%s0 + $0x608] sm:$0xff]
    %v210 = vld [vmem:[%s0 + $0x610] sm:$0xff]
    %v211 = vld [vmem:[%s0 + $0x618] sm:$0xff]
    %v212 = vld [vmem:[%s0 + $0x620] sm:$0xff]
    %v213 = vld [vmem:[%s0 + $0x628] sm:$0xff]
    %v214 = vld [vmem:[%s0 + $0x630] sm:$0xff]
    %v215 = vld [vmem:[%s0 + $0x638] sm:$0xff]
    %v216 = vld [vmem:[%s0 + $0x640] sm:$0xff]
    %v217 = vld [vmem:[%s0 + $0x648] sm:$0xff]
    %v218 = vld [vmem:[%s0 + $0x650] sm:$0xff]
    %v219 = vld [vmem:[%s0 + $0x658] sm:$0xff]
    %v220 = vld [vmem:[%s0 + $0x660] sm:$0xff]
    %v221 = vld [vmem:[%s0 + $0x668] sm:$0xff]
    %v222 = vld [vmem:[%s0 + $0x670] sm:$0xff]
    %v223 = vld [vmem:[%s0 + $0x678] sm:$0xff]
    %v224 = vld [vmem:[%s0 + $0x680] sm:$0xff]
    %v225 = vld [vmem:[%s0 + $0x688] sm:$0xff]
    %v226 = vld [vmem:[%s0 + $0x690] sm:$0xff]
    %v227 = vld [vmem:[%s0 + $0x698] sm:$0xff]
    %v228 = vld [vmem:[%s0 + $0x6a0] sm:$0xff]
    %v229 = vld [vmem:[%s0 + $0x6a8] sm:$0xff]
    %v230 = vld [vmem:[%s0 + $0x6b0] sm:$0xff]
    %v231 = vld [vmem:[%s0 + $0x6b8] sm:$0xff]
    %v232 = vld [vmem:[%s0 + $0x6c0] sm:$0xff]
    %v233 = vld [vmem:[%s0 + $0x6c8] sm:$0xff]
    %v234 = vld [vmem:[%s0 + $0x6d0] sm:$0xff]
    %v235 = vld [vmem:[%s0 + $0x6d8] sm:$0xff]
    %v236 = vld [vmem:[%s0 + $0x6e0] sm:$0xff]
    %v237 = vld [vmem:[%s0 + $0x6e8] sm:$0xff]
    %v238 = vld [vmem:[%s0 + $0x6f0] sm:$0xff]
    %v239 = vld [vmem:[%s0 + $0x6f8] sm:$0xff]
    %v240 = vld [vmem:[%s0 + $0x700] sm:$0xff]
    %v241 = vld [vmem:[%s0 + $0x708] sm:$0xff]
    %v242 = vld [vmem:[%s0 + $0x710] sm:$0xff]
    %v243 = vld [vmem:[%s0 + $0x718] sm:$0xff]
    %v244 = vld [vmem:[%s0 + $0x720] sm:$0xff]
    %v245 = vld [vmem:[%s0 + $0x728] sm:$0xff]
    %v246 = vld [vmem:[%s0 + $0x730] sm:$0xff]
    %v247 = vld [vmem:[%s0 + $0x738] sm:$0xff]
    %v248 = vld [vmem:[%s0 + $0x740] sm:$0xff]
    %v249 = vld [vmem:[%s0 + $0x748] sm:$0xff]
    %v250 = vld [vmem:[%s0 + $0x750] sm:$0xff]
    %v251 = vld [vmem:[%s0 + $0x758] sm:$0xff]
    %v252 = vld [vmem:[%s0 + $0x760] sm:$0xff]
    %v253 = vld [vmem:[%s0 + $0x768] sm:$0xff]
    %v254 = vld [vmem:[%s0 + $0x770] sm:$0xff]
    %v255 = vld [vmem:[%s0 + $0x778] sm:$0xff]
    %v256 = vld [vmem:[%s0 + $0x780] sm:$0xff]
    %v257 = vld [vmem:[%s0 + $0x788] sm:$0xff]
    %v258 = vld [vmem:[%s0 + $0x790] sm:$0xff]
    %v259 = vld [vmem:[%s0 + $0x798] sm:$0xff]
    %v260 = vld [vmem:[%s0 + $0x7a0] sm:$0xff]
    %v261 = vld [vmem:[%s0 + $0x7a8] sm:$0xff]
    %v262 = vld [vmem:[%s0 + $0x7b0] sm:$0xff]
    %v263 = vld [vmem:[%s0 + $0x7b8] sm:$0xff]
    %v264 = vld [vmem:[%s0 + $0x7c0] sm:$0xff]
    %v265 = vld [vmem:[%s0 + $0x7c8] sm:$0xff]
    %v266 = vld [vmem:[%s0 + $0x7d0] sm:$0xff]
    %v267 = vld [vmem:[%s0 + $0x7d8] sm:$0xff]
    %v268 = vld [vmem:[%s0 + $0x7e0] sm:$0xff]
    %v269 = vld [vmem:[%s0 + $0x7e8] sm:$0xff]
    %v270 = vld [vmem:[%s0 + $0x7f0] sm:$0xff]
    %v271 = vld [vmem:[%s0 + $0x7f8] sm:$0xff]
    %v272 = vld [vmem:[%s0 + $0x800] sm:$0xff]
    %v273 = vld [vmem:[%s0 + $0x808] sm:$0xff]
    %v274 = vld [vmem:[%s0 + $0x810] sm:$0xff]
    %v275 = vld [vmem:[%s0 + $0x818] sm:$0xff]
    %v276 = vld [vmem:[%s0 + $0x820] sm:$0xff]
    %v277 = vld [vmem:[%s0 + $0x828] sm:$0xff]
    %v278 = vld [vmem:[%s0 + $0x830] sm:$0xff]
    %v279 = vld [vmem:[%s0 + $0x838] sm:$0xff]
    %v280 = vld [vmem:[%s0 + $0x840] sm:$0xff]
    %v281 = vld [vmem:[%s0 + $0x848] sm:$0xff]
    %v282 = vld [vmem:[%s0 + $0x850] sm:$0xff]
    %v283 = vld [vmem:[%s0 + $0x858] sm:$0xff]
    %v284 = vld [vmem:[%s0 + $0x860] sm:$0xff]
    %v285 = vld [vmem:[%s0 + $0x868] sm:$0xff]
    %v286 = vld [vmem:[%s0 + $0x870] sm:$0xff]
    %v287 = vld [vmem:[%s0 + $0x878] sm:$0xff]
    %v288 = vld [vmem:[%s0 + $0x880] sm:$0xff]
    %v289 = vld [vmem:[%s0 + $0x888] sm:$0xff]
    %v290 = vld [vmem:[%s0 + $0x890] sm:$0xff]
    %v291 = vld [vmem:[%s0 + $0x898] sm:$0xff]
    %v292 = vld [vmem:[%s0 + $0x8a0] sm:$0xff]
    %v293 = vld [vmem:[%s0 + $0x8a8] sm:$0xff]
    %v294 = vld [vmem:[%s0 + $0x8b0] sm:$0xff]
    %v295 = vld [vmem:[%s0 + $0x8b8] sm:$0xff]
    %v296 = vld [vmem:[%s0 + $0x8c0] sm:$0xff]
    %v297 = vld [vmem:[%s0 + $0x8c8] sm:$0xff]
    %v298 = vld [vmem:[%s0 + $0x8d0] sm:$0xff]
    %v299 = vld [vmem:[%s0 + $0x8d8] sm:$0xff]
    %v300 = vld [vmem:[%s0 + $0x8e0] sm:$0xff]
    %v301 = vld [vmem:[%s0 + $0x8e8] sm:$0xff]
    %v302 = vld [vmem:[%s0 + $0x8f0] sm:$0xff]
    %v303 = vld [vmem:[%s0 + $0x8f8] sm:$0xff]
    %v304 = vld [vmem:[%s0 + $0x900] sm:$0xff]
    %v305 = vld [vmem:[%s0 + $0x908] sm:$0xff]
    %v306 = vld [vmem:[%s0 + $0x910] sm:$0xff]
    %v307 = vld [vmem:[%s0 + $0x918] sm:$0xff]
    %v308 = vld [vmem:[%s0 + $0x920] sm:$0xff]
    %v309 = vld [vmem:[%s0 + $0x928] sm:$0xff]
    %v310 = vld [vmem:[%s0 + $0x930] sm:$0xff]
    %v311 = vld [vmem:[%s0 + $0x938] sm:$0xff]
    %v312 = vld [vmem:[%s0 + $0x940] sm:$0xff]
    %v313 = vld [vmem:[%s0 + $0x948] sm:$0xff]
    %v314 = vld [vmem:[%s0 + $0x950] sm:$0xff]
    %v315 = vld [vmem:[%s0 + $0x958] sm:$0xff]
    %v316 = vld [vmem:[%s0 + $0x960] sm:$0xff]
    %v317 = vld [vmem:[%s0 + $0x968] sm:$0xff]
    %v318 = vld [vmem:[%s0 + $0x970] sm:$0xff]
    %v319 = vld [vmem:[%s0 + $0x978] sm:$0xff]
    %v320 = vld [vmem:[%s0 + $0x980] sm:$0xff]
    %v321 = vld [vmem:[%s0 + $0x988] sm:$0xff]
    %v322 = vld [vmem:[%s0 + $0x990] sm:$0xff]
    %v323 = vld [vmem:[%s0 + $0x998] sm:$0xff]
    %v324 = vld [vmem:[%s0 + $0x9a0] sm:$0xff]
    %v325 = vld [vmem:[%s0 + $0x9a8] sm:$0xff]
    %v326 = vld [vmem:[%s0 + $0x9b0] sm:$0xff]
    %v327 = vld [vmem:[%s0 + $0x9b8] sm:$0xff]
    %v328 = vld [vmem:[%s0 + $0x9c0] sm:$0xff]
    %v329 = vld [vmem:[%s0 + $0x9c8] sm:$0xff]
    %v330 = vld [vmem:[%s0 + $0x9d0] sm:$0xff]
    %v331 = vld [vmem:[%s0 + $0x9d8] sm:$0xff]
    %v332 = vld [vmem:[%s0 + $0x9e0] sm:$0xff]
    %v333 = vld [vmem:[%s0 + $0x9e8] sm:$0xff]
    %v334 = vld [vmem:[%s0 + $0x9f0] sm:$0xff]
    %v335 = vld [vmem:[%s0 + $0x9f8] sm:$0xff]
    %v336 = vld [vmem:[%s0 + $0xa00] sm:$0xff]
    %v337 = vld [vmem:[%s0 + $0xa08] sm:$0xff]
    %v338 = vld [vmem:[%s0 + $0xa10] sm:$0xff]
    %v339 = vld [vmem:[%s0 + $0xa18] sm:$0xff]
    %v340 = vld [vmem:[%s0 + $0xa20] sm:$0xff]
    %v341 = vld [vmem:[%s0 + $0xa28] sm:$0xff]
    %v342 = vld [vmem:[%s0 + $0xa30] sm:$0xff]
    %v343 = vld [vmem:[%s0 + $0xa38] sm:$0xff]
    %v344 = vld [vmem:[%s0 + $0xa40] sm:$0xff]
    %v345 = vld [vmem:[%s0 + $0xa48] sm:$0xff]
    %v346 = vld [vmem:[%s0 + $0xa50] sm:$0xff]
    %v347 = vld [vmem:[%s0 + $0xa58] sm:$0xff]
    %v348 = vld [vmem:[%s0 + $0xa60] sm:$0xff]
    %v349 = vld [vmem:[%s0 + $0xa68] sm:$0xff]
    %v350 = vld [vmem:[%s0 + $0xa70] sm:$0xff]
    %v351 = vld [vmem:[%s0 + $0xa78] sm:$0xff]
    %v352 = vpack.c.bf16 %v23, %v16
    %v353 = vpack.c.bf16 %v24, %v17
    %v354 = vpack.c.bf16 %v25, %v18
    %v355 = vpack.c.bf16 %v26, %v19
    %v356 = vpack.c.bf16 %v27, %v20
    %v357 = vpack.c.bf16 %v28, %v21
    %v358 = vpack.c.bf16 %v29, %v22
    %v359 = vpack.c.bf16 %v37, %v30
    %v360 = vpack.c.bf16 %v38, %v31
    %v361 = vpack.c.bf16 %v39, %v32
    %v362 = vpack.c.bf16 %v40, %v33
    %v363 = vpack.c.bf16 %v41, %v34
    %v364 = vpack.c.bf16 %v42, %v35
    %v365 = vpack.c.bf16 %v43, %v36
    %v366 = vpack.c.bf16 %v51, %v44
    %v367 = vpack.c.bf16 %v52, %v45
    %v368 = vpack.c.bf16 %v53, %v46
    %v369 = vpack.c.bf16 %v54, %v47
    %v370 = vpack.c.bf16 %v55, %v48
    %v371 = vpack.c.bf16 %v56, %v49
    %v372 = vpack.c.bf16 %v57, %v50
    %v373 = vpack.c.bf16 %v65, %v58
    %v374 = vpack.c.bf16 %v66, %v59
    %v375 = vpack.c.bf16 %v67, %v60
    %v376 = vpack.c.bf16 %v68, %v61
    %v377 = vpack.c.bf16 %v69, %v62
    %v378 = vpack.c.bf16 %v70, %v63
    %v379 = vpack.c.bf16 %v71, %v64
    %v380 = vpack.c.bf16 %v79, %v72
    %v381 = vpack.c.bf16 %v80, %v73
    %v382 = vpack.c.bf16 %v81, %v74
    %v383 = vpack.c.bf16 %v82, %v75
    %v384 = vpack.c.bf16 %v83, %v76
    %v385 = vpack.c.bf16 %v84, %v77
    %v386 = vpack.c.bf16 %v85, %v78
    %v387 = vpack.c.bf16 %v93, %v86
    %v388 = vpack.c.bf16 %v94, %v87
    %v389 = vpack.c.bf16 %v95, %v88
    %v390 = vpack.c.bf16 %v96, %v89
    %v391 = vpack.c.bf16 %v97, %v90
    %v392 = vpack.c.bf16 %v98, %v91
    %v393 = vpack.c.bf16 %v99, %v92
    %v394 = vpack.c.bf16 %v107, %v100
    %v395 = vpack.c.bf16 %v108, %v101
    %v396 = vpack.c.bf16 %v109, %v102
    %v397 = vpack.c.bf16 %v110, %v103
    %v398 = vpack.c.bf16 %v111, %v104
    %v399 = vpack.c.bf16 %v112, %v105
    %v400 = vpack.c.bf16 %v113, %v106
    %v401 = vpack.c.bf16 %v121, %v114
    %v402 = vpack.c.bf16 %v122, %v115
    %v403 = vpack.c.bf16 %v123, %v116
    %v404 = vpack.c.bf16 %v124, %v117
    %v405 = vpack.c.bf16 %v125, %v118
    %v406 = vpack.c.bf16 %v126, %v119
    %v407 = vpack.c.bf16 %v127, %v120
    %v408 = vpack.c.bf16 %v135, %v128
    %v409 = vpack.c.bf16 %v136, %v129
    %v410 = vpack.c.bf16 %v137, %v130
    %v411 = vpack.c.bf16 %v138, %v131
    %v412 = vpack.c.bf16 %v139, %v132
    %v413 = vpack.c.bf16 %v140, %v133
    %v414 = vpack.c.bf16 %v141, %v134
    %v415 = vpack.c.bf16 %v149, %v142
    %v416 = vpack.c.bf16 %v150, %v143
    %v417 = vpack.c.bf16 %v151, %v144
    %v418 = vpack.c.bf16 %v152, %v145
    %v419 = vpack.c.bf16 %v153, %v146
    %v420 = vpack.c.bf16 %v154, %v147
    %v421 = vpack.c.bf16 %v155, %v148
    %v422 = vpack.c.bf16 %v163, %v156
    %v423 = vpack.c.bf16 %v164, %v157
    %v424 = vpack.c.bf16 %v165, %v158
    %v425 = vpack.c.bf16 %v166, %v159
    %v426 = vpack.c.bf16 %v167, %v160
    %v427 = vpack.c.bf16 %v168, %v161
    %v428 = vpack.c.bf16 %v169, %v162
    %v429 = vpack.c.bf16 %v177, %v170
    %v430 = vpack.c.bf16 %v178, %v171
    %v431 = vpack.c.bf16 %v179, %v172
    %v432 = vpack.c.bf16 %v180, %v173
    %v433 = vpack.c.bf16 %v181, %v174
    %v434 = vpack.c.bf16 %v182, %v175
    %v435 = vpack.c.bf16 %v183, %v176
    %v436 = vpack.c.bf16 %v191, %v184
    %v437 = vpack.c.bf16 %v192, %v185
    %v438 = vpack.c.bf16 %v193, %v186
    %v439 = vpack.c.bf16 %v194, %v187
    %v440 = vpack.c.bf16 %v195, %v188
    %v441 = vpack.c.bf16 %v196, %v189
    %v442 = vpack.c.bf16 %v197, %v190
    %v443 = vpack.c.bf16 %v205, %v198
    %v444 = vpack.c.bf16 %v206, %v199
    %v445 = vpack.c.bf16 %v207, %v200
    %v446 = vpack.c.bf16 %v208, %v201
    %v447 = vpack.c.bf16 %v209, %v202
    %v448 = vpack.c.bf16 %v210, %v203
    %v449 = vpack.c.bf16 %v211, %v204
    %v450 = vpack.c.bf16 %v219, %v212
    %v451 = vpack.c.bf16 %v220, %v213
    %v452 = vpack.c.bf16 %v221, %v214
    %v453 = vpack.c.bf16 %v222, %v215
    %v454 = vpack.c.bf16 %v223, %v216
    %v455 = vpack.c.bf16 %v224, %v217
    %v456 = vpack.c.bf16 %v225, %v218
    %v457 = vpack.c.bf16 %v233, %v226
    %v458 = vpack.c.bf16 %v234, %v227
    %v459 = vpack.c.bf16 %v235, %v228
    %v460 = vpack.c.bf16 %v236, %v229
    %v461 = vpack.c.bf16 %v237, %v230
    %v462 = vpack.c.bf16 %v238, %v231
    %v463 = vpack.c.bf16 %v239, %v232
    %v464 = vpack.c.bf16 %v247, %v240
    %v465 = vpack.c.bf16 %v248, %v241
    %v466 = vpack.c.bf16 %v249, %v242
    %v467 = vpack.c.bf16 %v250, %v243
    %v468 = vpack.c.bf16 %v251, %v244
    %v469 = vpack.c.bf16 %v252, %v245
    %v470 = vpack.c.bf16 %v253, %v246
    %v471 = vpack.c.bf16 %v261, %v254
    %v472 = vpack.c.bf16 %v262, %v255
    %v473 = vpack.c.bf16 %v263, %v256
    %v474 = vpack.c.bf16 %v264, %v257
    %v475 = vpack.c.bf16 %v265, %v258
    %v476 = vpack.c.bf16 %v266, %v259
    %v477 = vpack.c.bf16 %v267, %v260
    %v478 = vpack.c.bf16 %v275, %v268
    %v479 = vpack.c.bf16 %v276, %v269
    %v480 = vpack.c.bf16 %v277, %v270
    %v481 = vpack.c.bf16 %v278, %v271
    %v482 = vpack.c.bf16 %v279, %v272
    %v483 = vpack.c.bf16 %v280, %v273
    %v484 = vpack.c.bf16 %v281, %v274
    %v485 = vpack.c.bf16 %v289, %v282
    %v486 = vpack.c.bf16 %v290, %v283
    %v487 = vpack.c.bf16 %v291, %v284
    %v488 = vpack.c.bf16 %v292, %v285
    %v489 = vpack.c.bf16 %v293, %v286
    %v490 = vpack.c.bf16 %v294, %v287
    %v491 = vpack.c.bf16 %v295, %v288
    %v492 = vpack.c.bf16 %v303, %v296
    %v493 = vpack.c.bf16 %v304, %v297
    %v494 = vpack.c.bf16 %v305, %v298
    %v495 = vpack.c.bf16 %v306, %v299
    %v496 = vpack.c.bf16 %v307, %v300
    %v497 = vpack.c.bf16 %v308, %v301
    %v498 = vpack.c.bf16 %v309, %v302
    %v499 = vpack.c.bf16 %v317, %v310
    %v500 = vpack.c.bf16 %v318, %v311
    %v501 = vpack.c.bf16 %v319, %v312
    %v502 = vpack.c.bf16 %v320, %v313
    %v503 = vpack.c.bf16 %v321, %v314
    %v504 = vpack.c.bf16 %v322, %v315
    %v505 = vpack.c.bf16 %v323, %v316
    %v506 = vpack.c.bf16 %v331, %v324
    %v507 = vpack.c.bf16 %v332, %v325
    %v508 = vpack.c.bf16 %v333, %v326
    %v509 = vpack.c.bf16 %v334, %v327
    %v510 = vpack.c.bf16 %v335, %v328
    %v511 = vpack.c.bf16 %v336, %v329
    %v512 = vpack.c.bf16 %v337, %v330
    %v513 = vpack.c.bf16 %v345, %v338
    %v514 = vpack.c.bf16 %v346, %v339
    %v515 = vpack.c.bf16 %v347, %v340
    %v516 = vpack.c.bf16 %v348, %v341
    %v517 = vpack.c.bf16 %v349, %v342
    %v518 = vpack.c.bf16 %v350, %v343
    %v519 = vpack.c.bf16 %v351, %v344
    %v520 = vld [vmem:[%s1] sm:$0xff]
    %v521 = vld [vmem:[%s1 + $0x8] sm:$0xff]
    %v522 = vld [vmem:[%s1 + $0x10] sm:$0xff]
    %v523 = vld [vmem:[%s1 + $0x18] sm:$0xff]
    %v524 = vld [vmem:[%s1 + $0x20] sm:$0xff]
    %v525 = vld [vmem:[%s1 + $0x28] sm:$0xff]
    %v526 = vld [vmem:[%s1 + $0x30] sm:$0xff]
    %v527 = vld [vmem:[%s1 + $0x38] sm:$0xff]
    %v528 = vld [vmem:[%s1 + $0x40] sm:$0xff]
    %v529 = vld [vmem:[%s1 + $0x48] sm:$0xff]
    %v530 = vld [vmem:[%s1 + $0x50] sm:$0xff]
    %v531 = vld [vmem:[%s1 + $0x58] sm:$0xff]
    %v532 = vld [vmem:[%s1 + $0x60] sm:$0xff]
    %v533 = vld [vmem:[%s1 + $0x68] sm:$0xff]
    %v534 = vld [vmem:[%s1 + $0x70] sm:$0xff]
    %v535 = vld [vmem:[%s1 + $0x78] sm:$0xff]
    %v536 = vld [vmem:[%s1 + $0x80] sm:$0xff]
    %v537 = vld [vmem:[%s1 + $0x88] sm:$0xff]
    %v538 = vld [vmem:[%s1 + $0x90] sm:$0xff]
    %v539 = vld [vmem:[%s1 + $0x98] sm:$0xff]
    %v540 = vld [vmem:[%s1 + $0xa0] sm:$0xff]
    %v541 = vld [vmem:[%s1 + $0xa8] sm:$0xff]
    %v542 = vld [vmem:[%s1 + $0xb0] sm:$0xff]
    %v543 = vld [vmem:[%s1 + $0xb8] sm:$0xff]
    %v544 = vld [vmem:[%s1 + $0xc0] sm:$0xff]
    %v545 = vld [vmem:[%s1 + $0xc8] sm:$0xff]
    %v546 = vld [vmem:[%s1 + $0xd0] sm:$0xff]
    %v547 = vld [vmem:[%s1 + $0xd8] sm:$0xff]
    %v548 = vld [vmem:[%s1 + $0xe0] sm:$0xff]
    %v549 = vld [vmem:[%s1 + $0xe8] sm:$0xff]
    %v550 = vld [vmem:[%s1 + $0xf0] sm:$0xff]
    %v551 = vld [vmem:[%s1 + $0xf8] sm:$0xff]
    %v552 = vld [vmem:[%s1 + $0x100] sm:$0xff]
    %v553 = vld [vmem:[%s1 + $0x108] sm:$0xff]
    %v554 = vld [vmem:[%s1 + $0x110] sm:$0xff]
    %v555 = vld [vmem:[%s1 + $0x118] sm:$0xff]
    %v556 = vpack.c.bf16 %v523, %v520
    %v557 = vpack.c.bf16 %v524, %v521
    %v558 = vpack.c.bf16 %v525, %v522
    %v559 = vpack.c.bf16 %v529, %v526
    %v560 = vpack.c.bf16 %v530, %v527
    %v561 = vpack.c.bf16 %v531, %v528
    %v562 = vpack.c.bf16 %v535, %v532
    %v563 = vpack.c.bf16 %v536, %v533
    %v564 = vpack.c.bf16 %v537, %v534
    %v565 = vpack.c.bf16 %v541, %v538
    %v566 = vpack.c.bf16 %v542, %v539
    %v567 = vpack.c.bf16 %v543, %v540
    %v568 = vpack.c.bf16 %v547, %v544
    %v569 = vpack.c.bf16 %v548, %v545
    %v570 = vpack.c.bf16 %v549, %v546
    %v571 = vpack.c.bf16 %v553, %v550
    %v572 = vpack.c.bf16 %v554, %v551
    %v573 = vpack.c.bf16 %v555, %v552
    %574 = vmatprep.subr.bf16.mxu0 %v353
    %575 = vmatpush1.bf16.msra.mxu0 %v352
    %576 = vmatprep.subr.bf16.mxu0 %v360
    %577 = vmatpush1.bf16.msra.mxu0 %v359
    %578 = vmatprep.subr.bf16.mxu0 %v367
    %579 = vmatpush1.bf16.msra.mxu0 %v366
    %580 = vmatprep.subr.bf16.mxu0 %v374
    %581 = vmatpush1.bf16.msra.mxu0 %v373
    %582 = vmatprep.subr.bf16.mxu0 %v381
    %583 = vmatpush1.bf16.msra.mxu0 %v380
    %584 = vmatprep.subr.bf16.mxu0 %v388
    %585 = vmatpush1.bf16.msra.mxu0 %v387
    %586 = vmatprep.subr.bf16.mxu0 %v395
    %587 = vmatpush1.bf16.msra.mxu0 %v394
    %588 = vmatprep.subr.bf16.mxu0 %v402
    %589 = vmatpush1.bf16.msra.mxu0 %v401
    %590 = vmatprep.subr.bf16.mxu0 %v409
    %591 = vmatpush1.bf16.msra.mxu0 %v408
    %592 = vmatprep.subr.bf16.mxu0 %v416
    %593 = vmatpush1.bf16.msra.mxu0 %v415
    %594 = vmatprep.subr.bf16.mxu0 %v423
    %595 = vmatpush1.bf16.msra.mxu0 %v422
    %596 = vmatprep.subr.bf16.mxu0 %v430
    %597 = vmatpush1.bf16.msra.mxu0 %v429
    %598 = vmatprep.subr.bf16.mxu0 %v437
    %599 = vmatpush1.bf16.msra.mxu0 %v436
    %600 = vmatprep.subr.bf16.mxu0 %v444
    %601 = vmatpush1.bf16.msra.mxu0 %v443
    %602 = vmatprep.subr.bf16.mxu0 %v451
    %603 = vmatpush1.bf16.msra.mxu0 %v450
    %604 = vmatprep.subr.bf16.mxu0 %v458
    %605 = vmatpush1.bf16.msra.mxu0 %v457
    %606 = vmatprep.mubr.bf16.mxu0 %v557
    %607 = vmatmul.mubr.bf16.gmra.mrb[0].mxu0 %v556
    %v608 = vpop.f32.mrb[0].mxu0
    %v609 = vadd.f32 0.0, %v608
    %v610 = vpop.f32.mrb[0].mxu0
    %v611 = vadd.f32 0.0, %v610
    %v612 = vpop.f32.mrb[0].mxu0
    %v613 = vadd.f32 0.0, %v612
    %v614 = vpop.f32.mrb[0].mxu0
    %v615 = vadd.f32 0.0, %v614
    %616 = vmatprep.mubr.bf16.mxu0 %v560
    %617 = vmatmul.mubr.bf16.gmra.mrb[0].mxu0 %v559
    %v618 = vpop.f32.mrb[0].mxu0
    %v619 = vadd.f32 0.0, %v618
    %v620 = vpop.f32.mrb[0].mxu0
    %v621 = vadd.f32 0.0, %v620
    %v622 = vpop.f32.mrb[0].mxu0
    %v623 = vadd.f32 0.0, %v622
    %v624 = vpop.f32.mrb[0].mxu0
    %v625 = vadd.f32 0.0, %v624
    %626 = vmatprep.mubr.bf16.mxu0 %v563
    %627 = vmatmul.mubr.bf16.gmra.mrb[0].mxu0 %v562
    %v628 = vpop.f32.mrb[0].mxu0
    %v629 = vadd.f32 0.0, %v628
    %v630 = vpop.f32.mrb[0].mxu0
    %v631 = vadd.f32 0.0, %v630
    %v632 = vpop.f32.mrb[0].mxu0
    %v633 = vadd.f32 0.0, %v632
    %v634 = vpop.f32.mrb[0].mxu0
    %v635 = vadd.f32 0.0, %v634
    %636 = vmatprep.mubr.bf16.mxu0 %v566
    %637 = vmatmul.mubr.bf16.gmra.mrb[0].mxu0 %v565
    %v638 = vpop.f32.mrb[0].mxu0
    %v639 = vadd.f32 0.0, %v638
    %v640 = vpop.f32.mrb[0].mxu0
    %v641 = vadd.f32 0.0, %v640
    %v642 = vpop.f32.mrb[0].mxu0
    %v643 = vadd.f32 0.0, %v642
    %v644 = vpop.f32.mrb[0].mxu0
    %v645 = vadd.f32 0.0, %v644
    %646 = vmatprep.mubr.bf16.mxu0 %v569
    %647 = vmatmul.mubr.bf16.gmra.mrb[0].mxu0 %v568
    %v648 = vpop.f32.mrb[0].mxu0
    %v649 = vadd.f32 0.0, %v648
    %v650 = vpop.f32.mrb[0].mxu0
    %v651 = vadd.f32 0.0, %v650
    %v652 = vpop.f32.mrb[0].mxu0
    %v653 = vadd.f32 0.0, %v652
    %v654 = vpop.f32.mrb[0].mxu0
    %v655 = vadd.f32 0.0, %v654
    %656 = vmatprep.mubr.bf16.mxu0 %v572
    %657 = vmatmul.mubr.bf16.gmra.mrb[0].mxu0 %v571
    %v658 = vpop.f32.mrb[0].mxu0
    %v659 = vadd.f32 0.0, %v658
    %v660 = vpop.f32.mrb[0].mxu0
    %v661 = vadd.f32 0.0, %v660
    %v662 = vpop.f32.mrb[0].mxu0
    %v663 = vadd.f32 0.0, %v662
    %v664 = vpop.f32.mrb[0].mxu0
    %v665 = vadd.f32 0.0, %v664
    %666 = vdwg.mxu0
    %667 = vmatprep.subr.bf16.mxu0 %v465
    %668 = vmatpush1.bf16.msra.mxu0 %v464
    %669 = vmatprep.subr.bf16.mxu0 %v472
    %670 = vmatpush1.bf16.msra.mxu0 %v471
    %671 = vmatprep.subr.bf16.mxu0 %v479
    %672 = vmatpush1.bf16.msra.mxu0 %v478
    %673 = vmatprep.subr.bf16.mxu0 %v486
    %674 = vmatpush1.bf16.msra.mxu0 %v485
    %675 = vmatprep.subr.bf16.mxu0 %v493
    %676 = vmatpush1.bf16.msra.mxu0 %v492
    %677 = vmatprep.subr.bf16.mxu0 %v500
    %678 = vmatpush1.bf16.msra.mxu0 %v499
    %679 = vmatprep.subr.bf16.mxu0 %v507
    %680 = vmatpush1.bf16.msra.mxu0 %v506
    %681 = vmatprep.subr.bf16.mxu0 %v514
    %682 = vmatpush1.bf16.msra.mxu0 %v513
    %683 = vmatprep.subr.bf16.mxu0 0
    %684 = vmatpush1.bf16.msra.mxu0 0
    %685 = vmatprep.subr.bf16.mxu0 0
    %686 = vmatpush1.bf16.msra.mxu0 0
    %687 = vmatprep.subr.bf16.mxu0 0
    %688 = vmatpush1.bf16.msra.mxu0 0
    %689 = vmatprep.subr.bf16.mxu0 0
    %690 = vmatpush1.bf16.msra.mxu0 0
    %691 = vmatprep.subr.bf16.mxu0 0
    %692 = vmatpush1.bf16.msra.mxu0 0
    %693 = vmatprep.subr.bf16.mxu0 0
    %694 = vmatpush1.bf16.msra.mxu0 0
    %695 = vmatprep.subr.bf16.mxu0 0
    %696 = vmatpush1.bf16.msra.mxu0 0
    %697 = vmatprep.subr.bf16.mxu0 0
    %698 = vmatpush1.bf16.msra.mxu0 0
    %699 = vmatprep.mubr.bf16.mxu0 0
    %700 = vmatmul.mubr.bf16.gmra.mrb[0].mxu0 %v558
    %v701 = vpop.f32.mrb[0].mxu0
    %v702 = vadd.f32 %v609, %v701
    %v703 = vpop.f32.mrb[0].mxu0
    %v704 = vadd.f32 %v611, %v703
    %v705 = vpop.f32.mrb[0].mxu0
    %v706 = vadd.f32 %v613, %v705
    %v707 = vpop.f32.mrb[0].mxu0
    %v708 = vadd.f32 %v615, %v707
    %709 = vmatprep.mubr.bf16.mxu0 0
    %710 = vmatmul.mubr.bf16.gmra.mrb[0].mxu0 %v561
    %v711 = vpop.f32.mrb[0].mxu0
    %v712 = vadd.f32 %v619, %v711
    %v713 = vpop.f32.mrb[0].mxu0
    %v714 = vadd.f32 %v621, %v713
    %v715 = vpop.f32.mrb[0].mxu0
    %v716 = vadd.f32 %v623, %v715
    %v717 = vpop.f32.mrb[0].mxu0
    %v718 = vadd.f32 %v625, %v717
    %719 = vmatprep.mubr.bf16.mxu0 0
    %720 = vmatmul.mubr.bf16.gmra.mrb[0].mxu0 %v564
    %v721 = vpop.f32.mrb[0].mxu0
    %v722 = vadd.f32 %v629, %v721
    %v723 = vpop.f32.mrb[0].mxu0
    %v724 = vadd.f32 %v631, %v723
    %v725 = vpop.f32.mrb[0].mxu0
    %v726 = vadd.f32 %v633, %v725
    %v727 = vpop.f32.mrb[0].mxu0
    %v728 = vadd.f32 %v635, %v727
    %729 = vmatprep.mubr.bf16.mxu0 0
    %730 = vmatmul.mubr.bf16.gmra.mrb[0].mxu0 %v567
    %v731 = vpop.f32.mrb[0].mxu0
    %v732 = vadd.f32 %v639, %v731
    %v733 = vpop.f32.mrb[0].mxu0
    %v734 = vadd.f32 %v641, %v733
    %v735 = vpop.f32.mrb[0].mxu0
    %v736 = vadd.f32 %v643, %v735
    %v737 = vpop.f32.mrb[0].mxu0
    %v738 = vadd.f32 %v645, %v737
    %739 = vmatprep.mubr.bf16.mxu0 0
    %740 = vmatmul.mubr.bf16.gmra.mrb[0].mxu0 %v570
    %v741 = vpop.f32.mrb[0].mxu0
    %v742 = vadd.f32 %v649, %v741
    %v743 = vpop.f32.mrb[0].mxu0
    %v744 = vadd.f32 %v651, %v743
    %v745 = vpop.f32.mrb[0].mxu0
    %v746 = vadd.f32 %v653, %v745
    %v747 = vpop.f32.mrb[0].mxu0
    %v748 = vadd.f32 %v655, %v747
    %749 = vmatprep.mubr.bf16.mxu0 0
    %750 = vmatmul.mubr.bf16.gmra.mrb[0].mxu0 %v573
    %v751 = vpop.f32.mrb[0].mxu0
    %v752 = vadd.f32 %v659, %v751
    %v753 = vpop.f32.mrb[0].mxu0
    %v754 = vadd.f32 %v661, %v753
    %v755 = vpop.f32.mrb[0].mxu0
    %v756 = vadd.f32 %v663, %v755
    %v757 = vpop.f32.mrb[0].mxu0
    %v758 = vadd.f32 %v665, %v757
    %759 = vdwg.mxu0
    %760 = vmatprep.subr.bf16.mxu0 %v355
    %761 = vmatpush1.bf16.msra.mxu0 %v354
    %762 = vmatprep.subr.bf16.mxu0 %v362
    %763 = vmatpush1.bf16.msra.mxu0 %v361
    %764 = vmatprep.subr.bf16.mxu0 %v369
    %765 = vmatpush1.bf16.msra.mxu0 %v368
    %766 = vmatprep.subr.bf16.mxu0 %v376
    %767 = vmatpush1.bf16.msra.mxu0 %v375
    %768 = vmatprep.subr.bf16.mxu0 %v383
    %769 = vmatpush1.bf16.msra.mxu0 %v382
    %770 = vmatprep.subr.bf16.mxu0 %v390
    %771 = vmatpush1.bf16.msra.mxu0 %v389
    %772 = vmatprep.subr.bf16.mxu0 %v397
    %773 = vmatpush1.bf16.msra.mxu0 %v396
    %774 = vmatprep.subr.bf16.mxu0 %v404
    %775 = vmatpush1.bf16.msra.mxu0 %v403
    %776 = vmatprep.subr.bf16.mxu0 %v411
    %777 = vmatpush1.bf16.msra.mxu0 %v410
    %778 = vmatprep.subr.bf16.mxu0 %v418
    %779 = vmatpush1.bf16.msra.mxu0 %v417
    %780 = vmatprep.subr.bf16.mxu0 %v425
    %781 = vmatpush1.bf16.msra.mxu0 %v424
    %782 = vmatprep.subr.bf16.mxu0 %v432
    %783 = vmatpush1.bf16.msra.mxu0 %v431
    %784 = vmatprep.subr.bf16.mxu0 %v439
    %785 = vmatpush1.bf16.msra.mxu0 %v438
    %786 = vmatprep.subr.bf16.mxu0 %v446
    %787 = vmatpush1.bf16.msra.mxu0 %v445
    %788 = vmatprep.subr.bf16.mxu0 %v453
    %789 = vmatpush1.bf16.msra.mxu0 %v452
    %790 = vmatprep.subr.bf16.mxu0 %v460
    %791 = vmatpush1.bf16.msra.mxu0 %v459
    %792 = vmatprep.mubr.bf16.mxu0 %v557
    %793 = vmatmul.mubr.bf16.gmra.mrb[0].mxu0 %v556
    %v794 = vpop.f32.mrb[0].mxu0
    %v795 = vadd.f32 0.0, %v794
    %v796 = vpop.f32.mrb[0].mxu0
    %v797 = vadd.f32 0.0, %v796
    %v798 = vpop.f32.mrb[0].mxu0
    %v799 = vadd.f32 0.0, %v798
    %v800 = vpop.f32.mrb[0].mxu0
    %v801 = vadd.f32 0.0, %v800
    %802 = vmatprep.mubr.bf16.mxu0 %v560
    %803 = vmatmul.mubr.bf16.gmra.mrb[0].mxu0 %v559
    %v804 = vpop.f32.mrb[0].mxu0
    %v805 = vadd.f32 0.0, %v804
    %v806 = vpop.f32.mrb[0].mxu0
    %v807 = vadd.f32 0.0, %v806
    %v808 = vpop.f32.mrb[0].mxu0
    %v809 = vadd.f32 0.0, %v808
    %v810 = vpop.f32.mrb[0].mxu0
    %v811 = vadd.f32 0.0, %v810
    %812 = vmatprep.mubr.bf16.mxu0 %v563
    %813 = vmatmul.mubr.bf16.gmra.mrb[0].mxu0 %v562
    %v814 = vpop.f32.mrb[0].mxu0
    %v815 = vadd.f32 0.0, %v814
    %v816 = vpop.f32.mrb[0].mxu0
    %v817 = vadd.f32 0.0, %v816
    %v818 = vpop.f32.mrb[0].mxu0
    %v819 = vadd.f32 0.0, %v818
    %v820 = vpop.f32.mrb[0].mxu0
    %v821 = vadd.f32 0.0, %v820
    %822 = vmatprep.mubr.bf16.mxu0 %v566
    %823 = vmatmul.mubr.bf16.gmra.mrb[0].mxu0 %v565
    %v824 = vpop.f32.mrb[0].mxu0
    %v825 = vadd.f32 0.0, %v824
    %v826 = vpop.f32.mrb[0].mxu0
    %v827 = vadd.f32 0.0, %v826
    %v828 = vpop.f32.mrb[0].mxu0
    %v829 = vadd.f32 0.0, %v828
    %v830 = vpop.f32.mrb[0].mxu0
    %v831 = vadd.f32 0.0, %v830
    %832 = vmatprep.mubr.bf16.mxu0 %v569
    %833 = vmatmul.mubr.bf16.gmra.mrb[0].mxu0 %v568
    %v834 = vpop.f32.mrb[0].mxu0
    %v835 = vadd.f32 0.0, %v834
    %v836 = vpop.f32.mrb[0].mxu0
    %v837 = vadd.f32 0.0, %v836
    %v838 = vpop.f32.mrb[0].mxu0
    %v839 = vadd.f32 0.0, %v838
    %v840 = vpop.f32.mrb[0].mxu0
    %v841 = vadd.f32 0.0, %v840
    %842 = vmatprep.mubr.bf16.mxu0 %v572
    %843 = vmatmul.mubr.bf16.gmra.mrb[0].mxu0 %v571
    %v844 = vpop.f32.mrb[0].mxu0
    %v845 = vadd.f32 0.0, %v844
    %v846 = vpop.f32.mrb[0].mxu0
    %v847 = vadd.f32 0.0, %v846
    %v848 = vpop.f32.mrb[0].mxu0
    %v849 = vadd.f32 0.0, %v848
    %v850 = vpop.f32.mrb[0].mxu0
    %v851 = vadd.f32 0.0, %v850
    %852 = vdwg.mxu0
    %853 = vmatprep.subr.bf16.mxu0 %v467
    %854 = vmatpush1.bf16.msra.mxu0 %v466
    %855 = vmatprep.subr.bf16.mxu0 %v474
    %856 = vmatpush1.bf16.msra.mxu0 %v473
    %857 = vmatprep.subr.bf16.mxu0 %v481
    %858 = vmatpush1.bf16.msra.mxu0 %v480
    %859 = vmatprep.subr.bf16.mxu0 %v488
    %860 = vmatpush1.bf16.msra.mxu0 %v487
    %861 = vmatprep.subr.bf16.mxu0 %v495
    %862 = vmatpush1.bf16.msra.mxu0 %v494
    %863 = vmatprep.subr.bf16.mxu0 %v502
    %864 = vmatpush1.bf16.msra.mxu0 %v501
    %865 = vmatprep.subr.bf16.mxu0 %v509
    %866 = vmatpush1.bf16.msra.mxu0 %v508
    %867 = vmatprep.subr.bf16.mxu0 %v516
    %868 = vmatpush1.bf16.msra.mxu0 %v515
    %869 = vmatprep.subr.bf16.mxu0 0
    %870 = vmatpush1.bf16.msra.mxu0 0
    %871 = vmatprep.subr.bf16.mxu0 0
    %872 = vmatpush1.bf16.msra.mxu0 0
    %873 = vmatprep.subr.bf16.mxu0 0
    %874 = vmatpush1.bf16.msra.mxu0 0
    %875 = vmatprep.subr.bf16.mxu0 0
    %876 = vmatpush1.bf16.msra.mxu0 0
    %877 = vmatprep.subr.bf16.mxu0 0
    %878 = vmatpush1.bf16.msra.mxu0 0
    %879 = vmatprep.subr.bf16.mxu0 0
    %880 = vmatpush1.bf16.msra.mxu0 0
    %881 = vmatprep.subr.bf16.mxu0 0
    %882 = vmatpush1.bf16.msra.mxu0 0
    %883 = vmatprep.subr.bf16.mxu0 0
    %884 = vmatpush1.bf16.msra.mxu0 0
    %885 = vmatprep.mubr.bf16.mxu0 0
    %886 = vmatmul.mubr.bf16.gmra.mrb[0].mxu0 %v558
    %v887 = vpop.f32.mrb[0].mxu0
    %v888 = vadd.f32 %v795, %v887
    %v889 = vpop.f32.mrb[0].mxu0
    %v890 = vadd.f32 %v797, %v889
    %v891 = vpop.f32.mrb[0].mxu0
    %v892 = vadd.f32 %v799, %v891
    %v893 = vpop.f32.mrb[0].mxu0
    %v894 = vadd.f32 %v801, %v893
    %895 = vmatprep.mubr.bf16.mxu0 0
    %896 = vmatmul.mubr.bf16.gmra.mrb[0].mxu0 %v561
    %v897 = vpop.f32.mrb[0].mxu0
    %v898 = vadd.f32 %v805, %v897
    %v899 = vpop.f32.mrb[0].mxu0
    %v900 = vadd.f32 %v807, %v899
    %v901 = vpop.f32.mrb[0].mxu0
    %v902 = vadd.f32 %v809, %v901
    %v903 = vpop.f32.mrb[0].mxu0
    %v904 = vadd.f32 %v811, %v903
    %905 = vmatprep.mubr.bf16.mxu0 0
    %906 = vmatmul.mubr.bf16.gmra.mrb[0].mxu0 %v564
    %v907 = vpop.f32.mrb[0].mxu0
    %v908 = vadd.f32 %v815, %v907
    %v909 = vpop.f32.mrb[0].mxu0
    %v910 = vadd.f32 %v817, %v909
    %v911 = vpop.f32.mrb[0].mxu0
    %v912 = vadd.f32 %v819, %v911
    %v913 = vpop.f32.mrb[0].mxu0
    %v914 = vadd.f32 %v821, %v913
    %915 = vmatprep.mubr.bf16.mxu0 0
    %916 = vmatmul.mubr.bf16.gmra.mrb[0].mxu0 %v567
    %v917 = vpop.f32.mrb[0].mxu0
    %v918 = vadd.f32 %v825, %v917
    %v919 = vpop.f32.mrb[0].mxu0
    %v920 = vadd.f32 %v827, %v919
    %v921 = vpop.f32.mrb[0].mxu0
    %v922 = vadd.f32 %v829, %v921
    %v923 = vpop.f32.mrb[0].mxu0
    %v924 = vadd.f32 %v831, %v923
    %925 = vmatprep.mubr.bf16.mxu0 0
    %926 = vmatmul.mubr.bf16.gmra.mrb[0].mxu0 %v570
    %v927 = vpop.f32.mrb[0].mxu0
    %v928 = vadd.f32 %v835, %v927
    %v929 = vpop.f32.mrb[0].mxu0
    %v930 = vadd.f32 %v837, %v929
    %v931 = vpop.f32.mrb[0].mxu0
    %v932 = vadd.f32 %v839, %v931
    %v933 = vpop.f32.mrb[0].mxu0
    %v934 = vadd.f32 %v841, %v933
    %935 = vmatprep.mubr.bf16.mxu0 0
    %936 = vmatmul.mubr.bf16.gmra.mrb[0].mxu0 %v573
    %v937 = vpop.f32.mrb[0].mxu0
    %v938 = vadd.f32 %v845, %v937
    %v939 = vpop.f32.mrb[0].mxu0
    %v940 = vadd.f32 %v847, %v939
    %v941 = vpop.f32.mrb[0].mxu0
    %v942 = vadd.f32 %v849, %v941
    %v943 = vpop.f32.mrb[0].mxu0
    %v944 = vadd.f32 %v851, %v943
    %945 = vdwg.mxu0
    %946 = vmatprep.subr.bf16.mxu0 %v357
    %947 = vmatpush1.bf16.msra.mxu0 %v356
    %948 = vmatprep.subr.bf16.mxu0 %v364
    %949 = vmatpush1.bf16.msra.mxu0 %v363
    %950 = vmatprep.subr.bf16.mxu0 %v371
    %951 = vmatpush1.bf16.msra.mxu0 %v370
    %952 = vmatprep.subr.bf16.mxu0 %v378
    %953 = vmatpush1.bf16.msra.mxu0 %v377
    %954 = vmatprep.subr.bf16.mxu0 %v385
    %955 = vmatpush1.bf16.msra.mxu0 %v384
    %956 = vmatprep.subr.bf16.mxu0 %v392
    %957 = vmatpush1.bf16.msra.mxu0 %v391
    %958 = vmatprep.subr.bf16.mxu0 %v399
    %959 = vmatpush1.bf16.msra.mxu0 %v398
    %960 = vmatprep.subr.bf16.mxu0 %v406
    %961 = vmatpush1.bf16.msra.mxu0 %v405
    %962 = vmatprep.subr.bf16.mxu0 %v413
    %963 = vmatpush1.bf16.msra.mxu0 %v412
    %964 = vmatprep.subr.bf16.mxu0 %v420
    %965 = vmatpush1.bf16.msra.mxu0 %v419
    %966 = vmatprep.subr.bf16.mxu0 %v427
    %967 = vmatpush1.bf16.msra.mxu0 %v426
    %968 = vmatprep.subr.bf16.mxu0 %v434
    %969 = vmatpush1.bf16.msra.mxu0 %v433
    %970 = vmatprep.subr.bf16.mxu0 %v441
    %971 = vmatpush1.bf16.msra.mxu0 %v440
    %972 = vmatprep.subr.bf16.mxu0 %v448
    %973 = vmatpush1.bf16.msra.mxu0 %v447
    %974 = vmatprep.subr.bf16.mxu0 %v455
    %975 = vmatpush1.bf16.msra.mxu0 %v454
    %976 = vmatprep.subr.bf16.mxu0 %v462
    %977 = vmatpush1.bf16.msra.mxu0 %v461
    %978 = vmatprep.mubr.bf16.mxu0 %v557
    %979 = vmatmul.mubr.bf16.gmra.mrb[0].mxu0 %v556
    %v980 = vpop.f32.mrb[0].mxu0
    %v981 = vadd.f32 0.0, %v980
    %v982 = vpop.f32.mrb[0].mxu0
    %v983 = vadd.f32 0.0, %v982
    %v984 = vpop.f32.mrb[0].mxu0
    %v985 = vadd.f32 0.0, %v984
    %v986 = vpop.f32.mrb[0].mxu0
    %v987 = vadd.f32 0.0, %v986
    %988 = vmatprep.mubr.bf16.mxu0 %v560
    %989 = vmatmul.mubr.bf16.gmra.mrb[0].mxu0 %v559
    %v990 = vpop.f32.mrb[0].mxu0
    %v991 = vadd.f32 0.0, %v990
    %v992 = vpop.f32.mrb[0].mxu0
    %v993 = vadd.f32 0.0, %v992
    %v994 = vpop.f32.mrb[0].mxu0
    %v995 = vadd.f32 0.0, %v994
    %v996 = vpop.f32.mrb[0].mxu0
    %v997 = vadd.f32 0.0, %v996
    %998 = vmatprep.mubr.bf16.mxu0 %v563
    %999 = vmatmul.mubr.bf16.gmra.mrb[0].mxu0 %v562
    %v1000 = vpop.f32.mrb[0].mxu0
    %v1001 = vadd.f32 0.0, %v1000
    %v1002 = vpop.f32.mrb[0].mxu0
    %v1003 = vadd.f32 0.0, %v1002
    %v1004 = vpop.f32.mrb[0].mxu0
    %v1005 = vadd.f32 0.0, %v1004
    %v1006 = vpop.f32.mrb[0].mxu0
    %v1007 = vadd.f32 0.0, %v1006
    %1008 = vmatprep.mubr.bf16.mxu0 %v566
    %1009 = vmatmul.mubr.bf16.gmra.mrb[0].mxu0 %v565
    %v1010 = vpop.f32.mrb[0].mxu0
    %v1011 = vadd.f32 0.0, %v1010
    %v1012 = vpop.f32.mrb[0].mxu0
    %v1013 = vadd.f32 0.0, %v1012
    %v1014 = vpop.f32.mrb[0].mxu0
    %v1015 = vadd.f32 0.0, %v1014
    %v1016 = vpop.f32.mrb[0].mxu0
    %v1017 = vadd.f32 0.0, %v1016
    %1018 = vmatprep.mubr.bf16.mxu0 %v569
    %1019 = vmatmul.mubr.bf16.gmra.mrb[0].mxu0 %v568
    %v1020 = vpop.f32.mrb[0].mxu0
    %v1021 = vadd.f32 0.0, %v1020
    %v1022 = vpop.f32.mrb[0].mxu0
    %v1023 = vadd.f32 0.0, %v1022
    %v1024 = vpop.f32.mrb[0].mxu0
    %v1025 = vadd.f32 0.0, %v1024
    %v1026 = vpop.f32.mrb[0].mxu0
    %v1027 = vadd.f32 0.0, %v1026
    %1028 = vmatprep.mubr.bf16.mxu0 %v572
    %1029 = vmatmul.mubr.bf16.gmra.mrb[0].mxu0 %v571
    %v1030 = vpop.f32.mrb[0].mxu0
    %v1031 = vadd.f32 0.0, %v1030
    %v1032 = vpop.f32.mrb[0].mxu0
    %v1033 = vadd.f32 0.0, %v1032
    %v1034 = vpop.f32.mrb[0].mxu0
    %v1035 = vadd.f32 0.0, %v1034
    %v1036 = vpop.f32.mrb[0].mxu0
    %v1037 = vadd.f32 0.0, %v1036
    %1038 = vdwg.mxu0
    %1039 = vmatprep.subr.bf16.mxu0 %v469
    %1040 = vmatpush1.bf16.msra.mxu0 %v468
    %1041 = vmatprep.subr.bf16.mxu0 %v476
    %1042 = vmatpush1.bf16.msra.mxu0 %v475
    %1043 = vmatprep.subr.bf16.mxu0 %v483
    %1044 = vmatpush1.bf16.msra.mxu0 %v482
    %1045 = vmatprep.subr.bf16.mxu0 %v490
    %1046 = vmatpush1.bf16.msra.mxu0 %v489
    %1047 = vmatprep.subr.bf16.mxu0 %v497
    %1048 = vmatpush1.bf16.msra.mxu0 %v496
    %1049 = vmatprep.subr.bf16.mxu0 %v504
    %1050 = vmatpush1.bf16.msra.mxu0 %v503
    %1051 = vmatprep.subr.bf16.mxu0 %v511
    %1052 = vmatpush1.bf16.msra.mxu0 %v510
    %1053 = vmatprep.subr.bf16.mxu0 %v518
    %1054 = vmatpush1.bf16.msra.mxu0 %v517
    %1055 = vmatprep.subr.bf16.mxu0 0
    %1056 = vmatpush1.bf16.msra.mxu0 0
    %1057 = vmatprep.subr.bf16.mxu0 0
    %1058 = vmatpush1.bf16.msra.mxu0 0
    %1059 = vmatprep.subr.bf16.mxu0 0
    %1060 = vmatpush1.bf16.msra.mxu0 0
    %1061 = vmatprep.subr.bf16.mxu0 0
    %1062 = vmatpush1.bf16.msra.mxu0 0
    %1063 = vmatprep.subr.bf16.mxu0 0
    %1064 = vmatpush1.bf16.msra.mxu0 0
    %1065 = vmatprep.subr.bf16.mxu0 0
    %1066 = vmatpush1.bf16.msra.mxu0 0
    %1067 = vmatprep.subr.bf16.mxu0 0
    %1068 = vmatpush1.bf16.msra.mxu0 0
    %1069 = vmatprep.subr.bf16.mxu0 0
    %1070 = vmatpush1.bf16.msra.mxu0 0
    %1071 = vmatprep.mubr.bf16.mxu0 0
    %1072 = vmatmul.mubr.bf16.gmra.mrb[0].mxu0 %v558
    %v1073 = vpop.f32.mrb[0].mxu0
    %v1074 = vadd.f32 %v981, %v1073
    %v1075 = vpop.f32.mrb[0].mxu0
    %v1076 = vadd.f32 %v983, %v1075
    %v1077 = vpop.f32.mrb[0].mxu0
    %v1078 = vadd.f32 %v985, %v1077
    %v1079 = vpop.f32.mrb[0].mxu0
    %v1080 = vadd.f32 %v987, %v1079
    %1081 = vmatprep.mubr.bf16.mxu0 0
    %1082 = vmatmul.mubr.bf16.gmra.mrb[0].mxu0 %v561
    %v1083 = vpop.f32.mrb[0].mxu0
    %v1084 = vadd.f32 %v991, %v1083
    %v1085 = vpop.f32.mrb[0].mxu0
    %v1086 = vadd.f32 %v993, %v1085
    %v1087 = vpop.f32.mrb[0].mxu0
    %v1088 = vadd.f32 %v995, %v1087
    %v1089 = vpop.f32.mrb[0].mxu0
    %v1090 = vadd.f32 %v997, %v1089
    %1091 = vmatprep.mubr.bf16.mxu0 0
    %1092 = vmatmul.mubr.bf16.gmra.mrb[0].mxu0 %v564
    %v1093 = vpop.f32.mrb[0].mxu0
    %v1094 = vadd.f32 %v1001, %v1093
    %v1095 = vpop.f32.mrb[0].mxu0
    %v1096 = vadd.f32 %v1003, %v1095
    %v1097 = vpop.f32.mrb[0].mxu0
    %v1098 = vadd.f32 %v1005, %v1097
    %v1099 = vpop.f32.mrb[0].mxu0
    %v1100 = vadd.f32 %v1007, %v1099
    %1101 = vmatprep.mubr.bf16.mxu0 0
    %1102 = vmatmul.mubr.bf16.gmra.mrb[0].mxu0 %v567
    %v1103 = vpop.f32.mrb[0].mxu0
    %v1104 = vadd.f32 %v1011, %v1103
    %v1105 = vpop.f32.mrb[0].mxu0
    %v1106 = vadd.f32 %v1013, %v1105
    %v1107 = vpop.f32.mrb[0].mxu0
    %v1108 = vadd.f32 %v1015, %v1107
    %v1109 = vpop.f32.mrb[0].mxu0
    %v1110 = vadd.f32 %v1017, %v1109
    %1111 = vmatprep.mubr.bf16.mxu0 0
    %1112 = vmatmul.mubr.bf16.gmra.mrb[0].mxu0 %v570
    %v1113 = vpop.f32.mrb[0].mxu0
    %v1114 = vadd.f32 %v1021, %v1113
    %v1115 = vpop.f32.mrb[0].mxu0
    %v1116 = vadd.f32 %v1023, %v1115
    %v1117 = vpop.f32.mrb[0].mxu0
    %v1118 = vadd.f32 %v1025, %v1117
    %v1119 = vpop.f32.mrb[0].mxu0
    %v1120 = vadd.f32 %v1027, %v1119
    %1121 = vmatprep.mubr.bf16.mxu0 0
    %1122 = vmatmul.mubr.bf16.gmra.mrb[0].mxu0 %v573
    %v1123 = vpop.f32.mrb[0].mxu0
    %v1124 = vadd.f32 %v1031, %v1123
    %v1125 = vpop.f32.mrb[0].mxu0
    %v1126 = vadd.f32 %v1033, %v1125
    %v1127 = vpop.f32.mrb[0].mxu0
    %v1128 = vadd.f32 %v1035, %v1127
    %v1129 = vpop.f32.mrb[0].mxu0
    %v1130 = vadd.f32 %v1037, %v1129
    %1131 = vdwg.mxu0
    %1132 = vmatprep.subr.bf16.mxu0 0
    %1133 = vmatpush1.bf16.msra.mxu0 %v358
    %1134 = vmatprep.subr.bf16.mxu0 0
    %1135 = vmatpush1.bf16.msra.mxu0 %v365
    %1136 = vmatprep.subr.bf16.mxu0 0
    %1137 = vmatpush1.bf16.msra.mxu0 %v372
    %1138 = vmatprep.subr.bf16.mxu0 0
    %1139 = vmatpush1.bf16.msra.mxu0 %v379
    %1140 = vmatprep.subr.bf16.mxu0 0
    %1141 = vmatpush1.bf16.msra.mxu0 %v386
    %1142 = vmatprep.subr.bf16.mxu0 0
    %1143 = vmatpush1.bf16.msra.mxu0 %v393
    %1144 = vmatprep.subr.bf16.mxu0 0
    %1145 = vmatpush1.bf16.msra.mxu0 %v400
    %1146 = vmatprep.subr.bf16.mxu0 0
    %1147 = vmatpush1.bf16.msra.mxu0 %v407
    %1148 = vmatprep.subr.bf16.mxu0 0
    %1149 = vmatpush1.bf16.msra.mxu0 %v414
    %1150 = vmatprep.subr.bf16.mxu0 0
    %1151 = vmatpush1.bf16.msra.mxu0 %v421
    %1152 = vmatprep.subr.bf16.mxu0 0
    %1153 = vmatpush1.bf16.msra.mxu0 %v428
    %1154 = vmatprep.subr.bf16.mxu0 0
    %1155 = vmatpush1.bf16.msra.mxu0 %v435
    %1156 = vmatprep.subr.bf16.mxu0 0
    %1157 = vmatpush1.bf16.msra.mxu0 %v442
    %1158 = vmatprep.subr.bf16.mxu0 0
    %1159 = vmatpush1.bf16.msra.mxu0 %v449
    %1160 = vmatprep.subr.bf16.mxu0 0
    %1161 = vmatpush1.bf16.msra.mxu0 %v456
    %1162 = vmatprep.subr.bf16.mxu0 0
    %1163 = vmatpush1.bf16.msra.mxu0 %v463
    %1164 = vmatprep.mubr.bf16.mxu0 %v557
    %1165 = vmatmul.mubr.bf16.gmra.mrb[0].mxu0 %v556
    %v1166 = vpop.f32.mrb[0].mxu0
    %v1167 = vadd.f32 0.0, %v1166
    %v1168 = vpop.f32.mrb[0].mxu0
    %v1169 = vpop.f32.mrb[0].mxu0
    %v1170 = vadd.f32 0.0, %v1169
    %v1171 = vpop.f32.mrb[0].mxu0
    %1172 = vmatprep.mubr.bf16.mxu0 %v560
    %1173 = vmatmul.mubr.bf16.gmra.mrb[0].mxu0 %v559
    %v1174 = vpop.f32.mrb[0].mxu0
    %v1175 = vadd.f32 0.0, %v1174
    %v1176 = vpop.f32.mrb[0].mxu0
    %v1177 = vpop.f32.mrb[0].mxu0
    %v1178 = vadd.f32 0.0, %v1177
    %v1179 = vpop.f32.mrb[0].mxu0
    %1180 = vmatprep.mubr.bf16.mxu0 %v563
    %1181 = vmatmul.mubr.bf16.gmra.mrb[0].mxu0 %v562
    %v1182 = vpop.f32.mrb[0].mxu0
    %v1183 = vadd.f32 0.0, %v1182
    %v1184 = vpop.f32.mrb[0].mxu0
    %v1185 = vpop.f32.mrb[0].mxu0
    %v1186 = vadd.f32 0.0, %v1185
    %v1187 = vpop.f32.mrb[0].mxu0
    %1188 = vmatprep.mubr.bf16.mxu0 %v566
    %1189 = vmatmul.mubr.bf16.gmra.mrb[0].mxu0 %v565
    %v1190 = vpop.f32.mrb[0].mxu0
    %v1191 = vadd.f32 0.0, %v1190
    %v1192 = vpop.f32.mrb[0].mxu0
    %v1193 = vpop.f32.mrb[0].mxu0
    %v1194 = vadd.f32 0.0, %v1193
    %v1195 = vpop.f32.mrb[0].mxu0
    %1196 = vmatprep.mubr.bf16.mxu0 %v569
    %1197 = vmatmul.mubr.bf16.gmra.mrb[0].mxu0 %v568
    %v1198 = vpop.f32.mrb[0].mxu0
    %v1199 = vadd.f32 0.0, %v1198
    %v1200 = vpop.f32.mrb[0].mxu0
    %v1201 = vpop.f32.mrb[0].mxu0
    %v1202 = vadd.f32 0.0, %v1201
    %v1203 = vpop.f32.mrb[0].mxu0
    %1204 = vmatprep.mubr.bf16.mxu0 %v572
    %1205 = vmatmul.mubr.bf16.gmra.mrb[0].mxu0 %v571
    %v1206 = vpop.f32.mrb[0].mxu0
    %v1207 = vadd.f32 0.0, %v1206
    %v1208 = vpop.f32.mrb[0].mxu0
    %v1209 = vpop.f32.mrb[0].mxu0
    %v1210 = vadd.f32 0.0, %v1209
    %v1211 = vpop.f32.mrb[0].mxu0
    %1212 = vdwg.mxu0
    %1213 = vmatprep.subr.bf16.mxu0 0
    %1214 = vmatpush1.bf16.msra.mxu0 %v470
    %1215 = vmatprep.subr.bf16.mxu0 0
    %1216 = vmatpush1.bf16.msra.mxu0 %v477
    %1217 = vmatprep.subr.bf16.mxu0 0
    %1218 = vmatpush1.bf16.msra.mxu0 %v484
    %1219 = vmatprep.subr.bf16.mxu0 0
    %1220 = vmatpush1.bf16.msra.mxu0 %v491
    %1221 = vmatprep.subr.bf16.mxu0 0
    %1222 = vmatpush1.bf16.msra.mxu0 %v498
    %1223 = vmatprep.subr.bf16.mxu0 0
    %1224 = vmatpush1.bf16.msra.mxu0 %v505
    %1225 = vmatprep.subr.bf16.mxu0 0
    %1226 = vmatpush1.bf16.msra.mxu0 %v512
    %1227 = vmatprep.subr.bf16.mxu0 0
    %1228 = vmatpush1.bf16.msra.mxu0 %v519
    %1229 = vmatprep.subr.bf16.mxu0 0
    %1230 = vmatpush1.bf16.msra.mxu0 0
    %1231 = vmatprep.subr.bf16.mxu0 0
    %1232 = vmatpush1.bf16.msra.mxu0 0
    %1233 = vmatprep.subr.bf16.mxu0 0
    %1234 = vmatpush1.bf16.msra.mxu0 0
    %1235 = vmatprep.subr.bf16.mxu0 0
    %1236 = vmatpush1.bf16.msra.mxu0 0
    %1237 = vmatprep.subr.bf16.mxu0 0
    %1238 = vmatpush1.bf16.msra.mxu0 0
    %1239 = vmatprep.subr.bf16.mxu0 0
    %1240 = vmatpush1.bf16.msra.mxu0 0
    %1241 = vmatprep.subr.bf16.mxu0 0
    %1242 = vmatpush1.bf16.msra.mxu0 0
    %1243 = vmatprep.subr.bf16.mxu0 0
    %1244 = vmatpush1.bf16.msra.mxu0 0
    %1245 = vmatprep.mubr.bf16.mxu0 0
    %1246 = vmatmul.mubr.bf16.gmra.mrb[0].mxu0 %v558
    %v1247 = vpop.f32.mrb[0].mxu0
    %v1248 = vadd.f32 %v1167, %v1247
    %v1249 = vpop.f32.mrb[0].mxu0
    %v1250 = vpop.f32.mrb[0].mxu0
    %v1251 = vadd.f32 %v1170, %v1250
    %v1252 = vpop.f32.mrb[0].mxu0
    %1253 = vmatprep.mubr.bf16.mxu0 0
    %1254 = vmatmul.mubr.bf16.gmra.mrb[0].mxu0 %v561
    %v1255 = vpop.f32.mrb[0].mxu0
    %v1256 = vadd.f32 %v1175, %v1255
    %v1257 = vpop.f32.mrb[0].mxu0
    %v1258 = vpop.f32.mrb[0].mxu0
    %v1259 = vadd.f32 %v1178, %v1258
    %v1260 = vpop.f32.mrb[0].mxu0
    %1261 = vmatprep.mubr.bf16.mxu0 0
    %1262 = vmatmul.mubr.bf16.gmra.mrb[0].mxu0 %v564
    %v1263 = vpop.f32.mrb[0].mxu0
    %v1264 = vadd.f32 %v1183, %v1263
    %v1265 = vpop.f32.mrb[0].mxu0
    %v1266 = vpop.f32.mrb[0].mxu0
    %v1267 = vadd.f32 %v1186, %v1266
    %v1268 = vpop.f32.mrb[0].mxu0
    %1269 = vmatprep.mubr.bf16.mxu0 0
    %1270 = vmatmul.mubr.bf16.gmra.mrb[0].mxu0 %v567
    %v1271 = vpop.f32.mrb[0].mxu0
    %v1272 = vadd.f32 %v1191, %v1271
    %v1273 = vpop.f32.mrb[0].mxu0
    %v1274 = vpop.f32.mrb[0].mxu0
    %v1275 = vadd.f32 %v1194, %v1274
    %v1276 = vpop.f32.mrb[0].mxu0
    %1277 = vmatprep.mubr.bf16.mxu0 0
    %1278 = vmatmul.mubr.bf16.gmra.mrb[0].mxu0 %v570
    %v1279 = vpop.f32.mrb[0].mxu0
    %v1280 = vadd.f32 %v1199, %v1279
    %v1281 = vpop.f32.mrb[0].mxu0
    %v1282 = vpop.f32.mrb[0].mxu0
    %v1283 = vadd.f32 %v1202, %v1282
    %v1284 = vpop.f32.mrb[0].mxu0
    %1285 = vmatprep.mubr.bf16.mxu0 0
    %1286 = vmatmul.mubr.bf16.gmra.mrb[0].mxu0 %v573
    %v1287 = vpop.f32.mrb[0].mxu0
    %v1288 = vadd.f32 %v1207, %v1287
    %v1289 = vpop.f32.mrb[0].mxu0
    %v1290 = vpop.f32.mrb[0].mxu0
    %v1291 = vadd.f32 %v1210, %v1290
    %v1292 = vpop.f32.mrb[0].mxu0
    %1293 = vdwg.mxu0
    %v1294 = vadd.f32 %v702, %v704
    %v1295 = vadd.f32 %v1294, %v888
    %v1296 = vadd.f32 %v1295, %v890
    %v1297 = vadd.f32 %v1296, %v1074
    %v1298 = vadd.f32 %v1297, %v1076
    %vm1299 = vcmask 130048
    %v1300 = vsel %vm1299, %v1248, 0.0
    %v1301 = vadd.f32 %v1298, %v1300
    %1302 = vadd.xlane.f32.xlu0 %v1301
    %v1303 = vpop.xlane.xlu0 %1302
    %v1304 = vadd.f32 %v706, %v708
    %v1305 = vadd.f32 %v1304, %v892
    %v1306 = vadd.f32 %v1305, %v894
    %v1307 = vadd.f32 %v1306, %v1078
    %v1308 = vadd.f32 %v1307, %v1080
    %v1309 = vsel %vm1299, %v1251, 0.0
    %v1310 = vadd.f32 %v1308, %v1309
    %1311 = vadd.xlane.f32.xlu0 %v1310
    %v1312 = vpop.xlane.xlu0 %1311
    %v1313 = vadd.f32 %v712, %v714
    %v1314 = vadd.f32 %v1313, %v898
    %v1315 = vadd.f32 %v1314, %v900
    %v1316 = vadd.f32 %v1315, %v1084
    %v1317 = vadd.f32 %v1316, %v1086
    %v1318 = vsel %vm1299, %v1256, 0.0
    %v1319 = vadd.f32 %v1317, %v1318
    %1320 = vadd.xlane.f32.xlu0 %v1319
    %v1321 = vpop.xlane.xlu0 %1320
    %v1322 = vadd.f32 %v716, %v718
    %v1323 = vadd.f32 %v1322, %v902
    %v1324 = vadd.f32 %v1323, %v904
    %v1325 = vadd.f32 %v1324, %v1088
    %v1326 = vadd.f32 %v1325, %v1090
    %v1327 = vsel %vm1299, %v1259, 0.0
    %v1328 = vadd.f32 %v1326, %v1327
    %1329 = vadd.xlane.f32.xlu0 %v1328
    %v1330 = vpop.xlane.xlu0 %1329
    %v1331 = vadd.f32 %v722, %v724
    %v1332 = vadd.f32 %v1331, %v908
    %v1333 = vadd.f32 %v1332, %v910
    %v1334 = vadd.f32 %v1333, %v1094
    %v1335 = vadd.f32 %v1334, %v1096
    %v1336 = vsel %vm1299, %v1264, 0.0
    %v1337 = vadd.f32 %v1335, %v1336
    %1338 = vadd.xlane.f32.xlu0 %v1337
    %v1339 = vpop.xlane.xlu0 %1338
    %v1340 = vadd.f32 %v726, %v728
    %v1341 = vadd.f32 %v1340, %v912
    %v1342 = vadd.f32 %v1341, %v914
    %v1343 = vadd.f32 %v1342, %v1098
    %v1344 = vadd.f32 %v1343, %v1100
    %v1345 = vsel %vm1299, %v1267, 0.0
    %v1346 = vadd.f32 %v1344, %v1345
    %1347 = vadd.xlane.f32.xlu0 %v1346
    %v1348 = vpop.xlane.xlu0 %1347
    %v1349 = vadd.f32 %v732, %v734
    %v1350 = vadd.f32 %v1349, %v918
    %v1351 = vadd.f32 %v1350, %v920
    %v1352 = vadd.f32 %v1351, %v1104
    %v1353 = vadd.f32 %v1352, %v1106
    %v1354 = vsel %vm1299, %v1272, 0.0
    %v1355 = vadd.f32 %v1353, %v1354
    %1356 = vadd.xlane.f32.xlu0 %v1355
    %v1357 = vpop.xlane.xlu0 %1356
    %v1358 = vadd.f32 %v736, %v738
    %v1359 = vadd.f32 %v1358, %v922
    %v1360 = vadd.f32 %v1359, %v924
    %v1361 = vadd.f32 %v1360, %v1108
    %v1362 = vadd.f32 %v1361, %v1110
    %v1363 = vsel %vm1299, %v1275, 0.0
    %v1364 = vadd.f32 %v1362, %v1363
    %1365 = vadd.xlane.f32.xlu0 %v1364
    %v1366 = vpop.xlane.xlu0 %1365
    %v1367 = vadd.f32 %v742, %v744
    %v1368 = vadd.f32 %v1367, %v928
    %v1369 = vadd.f32 %v1368, %v930
    %v1370 = vadd.f32 %v1369, %v1114
    %v1371 = vadd.f32 %v1370, %v1116
    %v1372 = vsel %vm1299, %v1280, 0.0
    %v1373 = vadd.f32 %v1371, %v1372
    %1374 = vadd.xlane.f32.xlu0 %v1373
    %v1375 = vpop.xlane.xlu0 %1374
    %v1376 = vadd.f32 %v746, %v748
    %v1377 = vadd.f32 %v1376, %v932
    %v1378 = vadd.f32 %v1377, %v934
    %v1379 = vadd.f32 %v1378, %v1118
    %v1380 = vadd.f32 %v1379, %v1120
    %v1381 = vsel %vm1299, %v1283, 0.0
    %v1382 = vadd.f32 %v1380, %v1381
    %1383 = vadd.xlane.f32.xlu0 %v1382
    %v1384 = vpop.xlane.xlu0 %1383
    %v1385 = vadd.f32 %v752, %v754
    %v1386 = vadd.f32 %v1385, %v938
    %v1387 = vadd.f32 %v1386, %v940
    %v1388 = vadd.f32 %v1387, %v1124
    %v1389 = vadd.f32 %v1388, %v1126
    %v1390 = vsel %vm1299, %v1288, 0.0
    %v1391 = vadd.f32 %v1389, %v1390
    %1392 = vadd.xlane.f32.xlu0 %v1391
    %v1393 = vpop.xlane.xlu0 %1392
    %v1394 = vadd.f32 %v756, %v758
    %v1395 = vadd.f32 %v1394, %v942
    %v1396 = vadd.f32 %v1395, %v944
    %v1397 = vadd.f32 %v1396, %v1128
    %v1398 = vadd.f32 %v1397, %v1130
    %v1399 = vsel %vm1299, %v1291, 0.0
    %v1400 = vadd.f32 %v1398, %v1399
    %1401 = vadd.xlane.f32.xlu0 %v1400
    %v1402 = vpop.xlane.xlu0 %1401
    %v1403 = vmul.f32 %v702, %v702
    %v1404 = vmul.f32 %v704, %v704
    %v1405 = vmul.f32 %v888, %v888
    %v1406 = vmul.f32 %v890, %v890
    %v1407 = vmul.f32 %v1074, %v1074
    %v1408 = vmul.f32 %v1076, %v1076
    %v1409 = vmul.f32 %v1248, %v1248
    %v1410 = vmul.f32 %v706, %v706
    %v1411 = vmul.f32 %v708, %v708
    %v1412 = vmul.f32 %v892, %v892
    %v1413 = vmul.f32 %v894, %v894
    %v1414 = vmul.f32 %v1078, %v1078
    %v1415 = vmul.f32 %v1080, %v1080
    %v1416 = vmul.f32 %v1251, %v1251
    %v1417 = vmul.f32 %v712, %v712
    %v1418 = vmul.f32 %v714, %v714
    %v1419 = vmul.f32 %v898, %v898
    %v1420 = vmul.f32 %v900, %v900
    %v1421 = vmul.f32 %v1084, %v1084
    %v1422 = vmul.f32 %v1086, %v1086
    %v1423 = vmul.f32 %v1256, %v1256
    %v1424 = vmul.f32 %v716, %v716
    %v1425 = vmul.f32 %v718, %v718
    %v1426 = vmul.f32 %v902, %v902
    %v1427 = vmul.f32 %v904, %v904
    %v1428 = vmul.f32 %v1088, %v1088
    %v1429 = vmul.f32 %v1090, %v1090
    %v1430 = vmul.f32 %v1259, %v1259
    %v1431 = vmul.f32 %v722, %v722
    %v1432 = vmul.f32 %v724, %v724
    %v1433 = vmul.f32 %v908, %v908
    %v1434 = vmul.f32 %v910, %v910
    %v1435 = vmul.f32 %v1094, %v1094
    %v1436 = vmul.f32 %v1096, %v1096
    %v1437 = vmul.f32 %v1264, %v1264
    %v1438 = vmul.f32 %v726, %v726
    %v1439 = vmul.f32 %v728, %v728
    %v1440 = vmul.f32 %v912, %v912
    %v1441 = vmul.f32 %v914, %v914
    %v1442 = vmul.f32 %v1098, %v1098
    %v1443 = vmul.f32 %v1100, %v1100
    %v1444 = vmul.f32 %v1267, %v1267
    %v1445 = vmul.f32 %v732, %v732
    %v1446 = vmul.f32 %v734, %v734
    %v1447 = vmul.f32 %v918, %v918
    %v1448 = vmul.f32 %v920, %v920
    %v1449 = vmul.f32 %v1104, %v1104
    %v1450 = vmul.f32 %v1106, %v1106
    %v1451 = vmul.f32 %v1272, %v1272
    %v1452 = vmul.f32 %v736, %v736
    %v1453 = vmul.f32 %v738, %v738
    %v1454 = vmul.f32 %v922, %v922
    %v1455 = vmul.f32 %v924, %v924
    %v1456 = vmul.f32 %v1108, %v1108
    %v1457 = vmul.f32 %v1110, %v1110
    %v1458 = vmul.f32 %v1275, %v1275
    %v1459 = vmul.f32 %v742, %v742
    %v1460 = vmul.f32 %v744, %v744
    %v1461 = vmul.f32 %v928, %v928
    %v1462 = vmul.f32 %v930, %v930
    %v1463 = vmul.f32 %v1114, %v1114
    %v1464 = vmul.f32 %v1116, %v1116
    %v1465 = vmul.f32 %v1280, %v1280
    %v1466 = vmul.f32 %v746, %v746
    %v1467 = vmul.f32 %v748, %v748
    %v1468 = vmul.f32 %v932, %v932
    %v1469 = vmul.f32 %v934, %v934
    %v1470 = vmul.f32 %v1118, %v1118
    %v1471 = vmul.f32 %v1120, %v1120
    %v1472 = vmul.f32 %v1283, %v1283
    %v1473 = vmul.f32 %v752, %v752
    %v1474 = vmul.f32 %v754, %v754
    %v1475 = vmul.f32 %v938, %v938
    %v1476 = vmul.f32 %v940, %v940
    %v1477 = vmul.f32 %v1124, %v1124
    %v1478 = vmul.f32 %v1126, %v1126
    %v1479 = vmul.f32 %v1288, %v1288
    %v1480 = vmul.f32 %v756, %v756
    %v1481 = vmul.f32 %v758, %v758
    %v1482 = vmul.f32 %v942, %v942
    %v1483 = vmul.f32 %v944, %v944
    %v1484 = vmul.f32 %v1128, %v1128
    %v1485 = vmul.f32 %v1130, %v1130
    %v1486 = vmul.f32 %v1291, %v1291
    %v1487 = vadd.f32 %v1403, %v1404
    %v1488 = vadd.f32 %v1487, %v1405
    %v1489 = vadd.f32 %v1488, %v1406
    %v1490 = vadd.f32 %v1489, %v1407
    %v1491 = vadd.f32 %v1490, %v1408
    %v1492 = vsel %vm1299, %v1409, 0.0
    %v1493 = vadd.f32 %v1491, %v1492
    %1494 = vadd.xlane.f32.xlu0 %v1493
    %v1495 = vpop.xlane.xlu0 %1494
    %v1496 = vadd.f32 %v1410, %v1411
    %v1497 = vadd.f32 %v1496, %v1412
    %v1498 = vadd.f32 %v1497, %v1413
    %v1499 = vadd.f32 %v1498, %v1414
    %v1500 = vadd.f32 %v1499, %v1415
    %v1501 = vsel %vm1299, %v1416, 0.0
    %v1502 = vadd.f32 %v1500, %v1501
    %1503 = vadd.xlane.f32.xlu0 %v1502
    %v1504 = vpop.xlane.xlu0 %1503
    %v1505 = vadd.f32 %v1417, %v1418
    %v1506 = vadd.f32 %v1505, %v1419
    %v1507 = vadd.f32 %v1506, %v1420
    %v1508 = vadd.f32 %v1507, %v1421
    %v1509 = vadd.f32 %v1508, %v1422
    %v1510 = vsel %vm1299, %v1423, 0.0
    %v1511 = vadd.f32 %v1509, %v1510
    %1512 = vadd.xlane.f32.xlu0 %v1511
    %v1513 = vpop.xlane.xlu0 %1512
    %v1514 = vadd.f32 %v1424, %v1425
    %v1515 = vadd.f32 %v1514, %v1426
    %v1516 = vadd.f32 %v1515, %v1427
    %v1517 = vadd.f32 %v1516, %v1428
    %v1518 = vadd.f32 %v1517, %v1429
    %v1519 = vsel %vm1299, %v1430, 0.0
    %v1520 = vadd.f32 %v1518, %v1519
    %1521 = vadd.xlane.f32.xlu0 %v1520
    %v1522 = vpop.xlane.xlu0 %1521
    %v1523 = vadd.f32 %v1431, %v1432
    %v1524 = vadd.f32 %v1523, %v1433
    %v1525 = vadd.f32 %v1524, %v1434
    %v1526 = vadd.f32 %v1525, %v1435
    %v1527 = vadd.f32 %v1526, %v1436
    %v1528 = vsel %vm1299, %v1437, 0.0
    %v1529 = vadd.f32 %v1527, %v1528
    %1530 = vadd.xlane.f32.xlu0 %v1529
    %v1531 = vpop.xlane.xlu0 %1530
    %v1532 = vadd.f32 %v1438, %v1439
    %v1533 = vadd.f32 %v1532, %v1440
    %v1534 = vadd.f32 %v1533, %v1441
    %v1535 = vadd.f32 %v1534, %v1442
    %v1536 = vadd.f32 %v1535, %v1443
    %v1537 = vsel %vm1299, %v1444, 0.0
    %v1538 = vadd.f32 %v1536, %v1537
    %1539 = vadd.xlane.f32.xlu0 %v1538
    %v1540 = vpop.xlane.xlu0 %1539
    %v1541 = vadd.f32 %v1445, %v1446
    %v1542 = vadd.f32 %v1541, %v1447
    %v1543 = vadd.f32 %v1542, %v1448
    %v1544 = vadd.f32 %v1543, %v1449
    %v1545 = vadd.f32 %v1544, %v1450
    %v1546 = vsel %vm1299, %v1451, 0.0
    %v1547 = vadd.f32 %v1545, %v1546
    %1548 = vadd.xlane.f32.xlu0 %v1547
    %v1549 = vpop.xlane.xlu0 %1548
    %v1550 = vadd.f32 %v1452, %v1453
    %v1551 = vadd.f32 %v1550, %v1454
    %v1552 = vadd.f32 %v1551, %v1455
    %v1553 = vadd.f32 %v1552, %v1456
    %v1554 = vadd.f32 %v1553, %v1457
    %v1555 = vsel %vm1299, %v1458, 0.0
    %v1556 = vadd.f32 %v1554, %v1555
    %1557 = vadd.xlane.f32.xlu0 %v1556
    %v1558 = vpop.xlane.xlu0 %1557
    %v1559 = vadd.f32 %v1459, %v1460
    %v1560 = vadd.f32 %v1559, %v1461
    %v1561 = vadd.f32 %v1560, %v1462
    %v1562 = vadd.f32 %v1561, %v1463
    %v1563 = vadd.f32 %v1562, %v1464
    %v1564 = vsel %vm1299, %v1465, 0.0
    %v1565 = vadd.f32 %v1563, %v1564
    %1566 = vadd.xlane.f32.xlu0 %v1565
    %v1567 = vpop.xlane.xlu0 %1566
    %v1568 = vadd.f32 %v1466, %v1467
    %v1569 = vadd.f32 %v1568, %v1468
    %v1570 = vadd.f32 %v1569, %v1469
    %v1571 = vadd.f32 %v1570, %v1470
    %v1572 = vadd.f32 %v1571, %v1471
    %v1573 = vsel %vm1299, %v1472, 0.0
    %v1574 = vadd.f32 %v1572, %v1573
    %1575 = vadd.xlane.f32.xlu0 %v1574
    %v1576 = vpop.xlane.xlu0 %1575
    %v1577 = vadd.f32 %v1473, %v1474
    %v1578 = vadd.f32 %v1577, %v1475
    %v1579 = vadd.f32 %v1578, %v1476
    %v1580 = vadd.f32 %v1579, %v1477
    %v1581 = vadd.f32 %v1580, %v1478
    %v1582 = vsel %vm1299, %v1479, 0.0
    %v1583 = vadd.f32 %v1581, %v1582
    %1584 = vadd.xlane.f32.xlu0 %v1583
    %v1585 = vpop.xlane.xlu0 %1584
    %v1586 = vadd.f32 %v1480, %v1481
    %v1587 = vadd.f32 %v1586, %v1482
    %v1588 = vadd.f32 %v1587, %v1483
    %v1589 = vadd.f32 %v1588, %v1484
    %v1590 = vadd.f32 %v1589, %v1485
    %v1591 = vsel %vm1299, %v1486, 0.0
    %v1592 = vadd.f32 %v1590, %v1591
    %1593 = vadd.xlane.f32.xlu0 %v1592
    %v1594 = vpop.xlane.xlu0 %1593
    %v1595 = vmul.f32 %v1303, 0.0012755102
    %v1596 = vmul.f32 %v1312, 0.0012755102
    %v1597 = vmul.f32 %v1321, 0.0012755102
    %v1598 = vmul.f32 %v1330, 0.0012755102
    %v1599 = vmul.f32 %v1339, 0.0012755102
    %v1600 = vmul.f32 %v1348, 0.0012755102
    %v1601 = vmul.f32 %v1357, 0.0012755102
    %v1602 = vmul.f32 %v1366, 0.0012755102
    %v1603 = vmul.f32 %v1375, 0.0012755102
    %v1604 = vmul.f32 %v1384, 0.0012755102
    %v1605 = vmul.f32 %v1393, 0.0012755102
    %v1606 = vmul.f32 %v1402, 0.0012755102
    %v1607 = vmul.f32 %v1495, 0.0012755102
    %v1608 = vmul.f32 %v1504, 0.0012755102
    %v1609 = vmul.f32 %v1513, 0.0012755102
    %v1610 = vmul.f32 %v1522, 0.0012755102
    %v1611 = vmul.f32 %v1531, 0.0012755102
    %v1612 = vmul.f32 %v1540, 0.0012755102
    %v1613 = vmul.f32 %v1549, 0.0012755102
    %v1614 = vmul.f32 %v1558, 0.0012755102
    %v1615 = vmul.f32 %v1567, 0.0012755102
    %v1616 = vmul.f32 %v1576, 0.0012755102
    %v1617 = vmul.f32 %v1585, 0.0012755102
    %v1618 = vmul.f32 %v1594, 0.0012755102
    %v1619 = vmul.f32 %v1595, %v1595
    %v1620 = vmul.f32 %v1596, %v1596
    %v1621 = vmul.f32 %v1597, %v1597
    %v1622 = vmul.f32 %v1598, %v1598
    %v1623 = vmul.f32 %v1599, %v1599
    %v1624 = vmul.f32 %v1600, %v1600
    %v1625 = vmul.f32 %v1601, %v1601
    %v1626 = vmul.f32 %v1602, %v1602
    %v1627 = vmul.f32 %v1603, %v1603
    %v1628 = vmul.f32 %v1604, %v1604
    %v1629 = vmul.f32 %v1605, %v1605
    %v1630 = vmul.f32 %v1606, %v1606
    %v1631 = vsub.f32 %v1607, %v1619
    %v1632 = vsub.f32 %v1608, %v1620
    %v1633 = vsub.f32 %v1609, %v1621
    %v1634 = vsub.f32 %v1610, %v1622
    %v1635 = vsub.f32 %v1611, %v1623
    %v1636 = vsub.f32 %v1612, %v1624
    %v1637 = vsub.f32 %v1613, %v1625
    %v1638 = vsub.f32 %v1614, %v1626
    %v1639 = vsub.f32 %v1615, %v1627
    %v1640 = vsub.f32 %v1616, %v1628
    %v1641 = vsub.f32 %v1617, %v1629
    %v1642 = vsub.f32 %v1618, %v1630
    %v1643 = vmax.f32 %v1631, 0.0
    %v1644 = vmax.f32 %v1632, 0.0
    %v1645 = vmax.f32 %v1633, 0.0
    %v1646 = vmax.f32 %v1634, 0.0
    %v1647 = vmax.f32 %v1635, 0.0
    %v1648 = vmax.f32 %v1636, 0.0
    %v1649 = vmax.f32 %v1637, 0.0
    %v1650 = vmax.f32 %v1638, 0.0
    %v1651 = vmax.f32 %v1639, 0.0
    %v1652 = vmax.f32 %v1640, 0.0
    %v1653 = vmax.f32 %v1641, 0.0
    %v1654 = vmax.f32 %v1642, 0.0
    %v1655 = vld [vmem:[%s2] sm:$0xff]
    %v1656 = vld [vmem:[%s2 + $0x8] sm:$0xff]
    %v1657 = vld [vmem:[%s2 + $0x10] sm:$0xff]
    %v1658 = vld [vmem:[%s2 + $0x18] sm:$0xff]
    %v1659 = vld [vmem:[%s2 + $0x20] sm:$0xff]
    %v1660 = vld [vmem:[%s2 + $0x28] sm:$0xff]
    %v1661 = vld [vmem:[%s2 + $0x30] sm:$0xff]
    %v1662 = vld [vmem:[%s2 + $0x38] sm:$0xff]
    %v1663 = vld [vmem:[%s2 + $0x40] sm:$0xff]
    %v1664 = vld [vmem:[%s2 + $0x48] sm:$0xff]
    %v1665 = vld [vmem:[%s2 + $0x50] sm:$0xff]
    %v1666 = vld [vmem:[%s2 + $0x58] sm:$0xff]
    %v1667 = vadd.f32 %v1643, 0.001
    %v1668 = vadd.f32 %v1644, 0.001
    %v1669 = vadd.f32 %v1645, 0.001
    %v1670 = vadd.f32 %v1646, 0.001
    %v1671 = vadd.f32 %v1647, 0.001
    %v1672 = vadd.f32 %v1648, 0.001
    %v1673 = vadd.f32 %v1649, 0.001
    %v1674 = vadd.f32 %v1650, 0.001
    %v1675 = vadd.f32 %v1651, 0.001
    %v1676 = vadd.f32 %v1652, 0.001
    %v1677 = vadd.f32 %v1653, 0.001
    %v1678 = vadd.f32 %v1654, 0.001
    %v1679 = vrsqrt.pop %v1667
    %v1680 = vrsqrt.pop %v1668
    %v1681 = vrsqrt.pop %v1669
    %v1682 = vrsqrt.pop %v1670
    %v1683 = vrsqrt.pop %v1671
    %v1684 = vrsqrt.pop %v1672
    %v1685 = vrsqrt.pop %v1673
    %v1686 = vrsqrt.pop %v1674
    %v1687 = vrsqrt.pop %v1675
    %v1688 = vrsqrt.pop %v1676
    %v1689 = vrsqrt.pop %v1677
    %v1690 = vrsqrt.pop %v1678
    %v1691 = vmul.f32 %v1679, %v1655
    %v1692 = vmul.f32 %v1680, %v1656
    %v1693 = vmul.f32 %v1681, %v1657
    %v1694 = vmul.f32 %v1682, %v1658
    %v1695 = vmul.f32 %v1683, %v1659
    %v1696 = vmul.f32 %v1684, %v1660
    %v1697 = vmul.f32 %v1685, %v1661
    %v1698 = vmul.f32 %v1686, %v1662
    %v1699 = vmul.f32 %v1687, %v1663
    %v1700 = vmul.f32 %v1688, %v1664
    %v1701 = vmul.f32 %v1689, %v1665
    %v1702 = vmul.f32 %v1690, %v1666
    %v1703 = vmul.f32 %v1595, %v1691
    %v1704 = vmul.f32 %v1596, %v1692
    %v1705 = vmul.f32 %v1597, %v1693
    %v1706 = vmul.f32 %v1598, %v1694
    %v1707 = vmul.f32 %v1599, %v1695
    %v1708 = vmul.f32 %v1600, %v1696
    %v1709 = vmul.f32 %v1601, %v1697
    %v1710 = vmul.f32 %v1602, %v1698
    %v1711 = vmul.f32 %v1603, %v1699
    %v1712 = vmul.f32 %v1604, %v1700
    %v1713 = vmul.f32 %v1605, %v1701
    %v1714 = vmul.f32 %v1606, %v1702
    %1727 = vrot.lane.b32.xlu0 %v1703, 1
    %v1728 = vpop.permute.xlu0 %1727
    %1729 = vrot.lane.b32.xlu0 %v1704, 1
    %v1730 = vpop.permute.xlu0 %1729
    %1731 = vrot.lane.b32.xlu0 %v1705, 1
    %v1732 = vpop.permute.xlu0 %1731
    %1733 = vrot.lane.b32.xlu0 %v1706, 1
    %v1734 = vpop.permute.xlu0 %1733
    %1735 = vrot.lane.b32.xlu0 %v1707, 1
    %v1736 = vpop.permute.xlu0 %1735
    %1737 = vrot.lane.b32.xlu0 %v1708, 1
    %v1738 = vpop.permute.xlu0 %1737
    %1739 = vrot.lane.b32.xlu0 %v1709, 1
    %v1740 = vpop.permute.xlu0 %1739
    %1741 = vrot.lane.b32.xlu0 %v1710, 1
    %v1742 = vpop.permute.xlu0 %1741
    %1743 = vrot.lane.b32.xlu0 %v1711, 1
    %v1744 = vpop.permute.xlu0 %1743
    %1745 = vrot.lane.b32.xlu0 %v1712, 1
    %v1746 = vpop.permute.xlu0 %1745
    %1747 = vrot.lane.b32.xlu0 %v1713, 1
    %v1748 = vpop.permute.xlu0 %1747
    %1749 = vrot.lane.b32.xlu0 %v1714, 1
    %v1750 = vpop.permute.xlu0 %1749
    %v1763 = vsub.f32 %v1655, %v1728
    %v1764 = vsub.f32 %v1656, %v1730
    %v1765 = vsub.f32 %v1657, %v1732
    %v1766 = vsub.f32 %v1658, %v1734
    %v1767 = vsub.f32 %v1659, %v1736
    %v1768 = vsub.f32 %v1660, %v1738
    %v1769 = vsub.f32 %v1661, %v1740
    %v1770 = vsub.f32 %v1662, %v1742
    %v1771 = vsub.f32 %v1663, %v1744
    %v1772 = vsub.f32 %v1664, %v1746
    %v1773 = vsub.f32 %v1665, %v1748
    %v1774 = vsub.f32 %v1666, %v1750
    %1776 = vset.pattern.permute.xlu0 0
    %1777 = vperm.xlu0 %1776, %v1691
    %v1778 = vpop.permute.xlu0 %1777
    %1781 = vset.pattern.permute.xlu0 0
    %1782 = vperm.xlu0 %1781, %v1692
    %v1783 = vpop.permute.xlu0 %1782
    %1786 = vset.pattern.permute.xlu0 0
    %1787 = vperm.xlu0 %1786, %v1693
    %v1788 = vpop.permute.xlu0 %1787
    %1791 = vset.pattern.permute.xlu0 0
    %1792 = vperm.xlu0 %1791, %v1694
    %v1793 = vpop.permute.xlu0 %1792
    %1796 = vset.pattern.permute.xlu0 0
    %1797 = vperm.xlu0 %1796, %v1695
    %v1798 = vpop.permute.xlu0 %1797
    %1801 = vset.pattern.permute.xlu0 0
    %1802 = vperm.xlu0 %1801, %v1696
    %v1803 = vpop.permute.xlu0 %1802
    %1806 = vset.pattern.permute.xlu0 0
    %1807 = vperm.xlu0 %1806, %v1697
    %v1808 = vpop.permute.xlu0 %1807
    %1811 = vset.pattern.permute.xlu0 0
    %1812 = vperm.xlu0 %1811, %v1698
    %v1813 = vpop.permute.xlu0 %1812
    %1816 = vset.pattern.permute.xlu0 0
    %1817 = vperm.xlu0 %1816, %v1699
    %v1818 = vpop.permute.xlu0 %1817
    %1821 = vset.pattern.permute.xlu0 0
    %1822 = vperm.xlu0 %1821, %v1700
    %v1823 = vpop.permute.xlu0 %1822
    %1826 = vset.pattern.permute.xlu0 0
    %1827 = vperm.xlu0 %1826, %v1701
    %v1828 = vpop.permute.xlu0 %1827
    %1831 = vset.pattern.permute.xlu0 0
    %1832 = vperm.xlu0 %1831, %v1702
    %v1833 = vpop.permute.xlu0 %1832
    %v1835 = vmul.f32 %v702, %v1778
    %v1836 = vmul.f32 %v704, %v1778
    %v1837 = vmul.f32 %v888, %v1778
    %v1838 = vmul.f32 %v890, %v1778
    %v1839 = vmul.f32 %v1074, %v1778
    %v1840 = vmul.f32 %v1076, %v1778
    %v1841 = vmul.f32 %v1248, %v1778
    %v1842 = vmul.f32 %v706, %v1783
    %v1843 = vmul.f32 %v708, %v1783
    %v1844 = vmul.f32 %v892, %v1783
    %v1845 = vmul.f32 %v894, %v1783
    %v1846 = vmul.f32 %v1078, %v1783
    %v1847 = vmul.f32 %v1080, %v1783
    %v1848 = vmul.f32 %v1251, %v1783
    %v1849 = vmul.f32 %v712, %v1788
    %v1850 = vmul.f32 %v714, %v1788
    %v1851 = vmul.f32 %v898, %v1788
    %v1852 = vmul.f32 %v900, %v1788
    %v1853 = vmul.f32 %v1084, %v1788
    %v1854 = vmul.f32 %v1086, %v1788
    %v1855 = vmul.f32 %v1256, %v1788
    %v1856 = vmul.f32 %v716, %v1793
    %v1857 = vmul.f32 %v718, %v1793
    %v1858 = vmul.f32 %v902, %v1793
    %v1859 = vmul.f32 %v904, %v1793
    %v1860 = vmul.f32 %v1088, %v1793
    %v1861 = vmul.f32 %v1090, %v1793
    %v1862 = vmul.f32 %v1259, %v1793
    %v1863 = vmul.f32 %v722, %v1798
    %v1864 = vmul.f32 %v724, %v1798
    %v1865 = vmul.f32 %v908, %v1798
    %v1866 = vmul.f32 %v910, %v1798
    %v1867 = vmul.f32 %v1094, %v1798
    %v1868 = vmul.f32 %v1096, %v1798
    %v1869 = vmul.f32 %v1264, %v1798
    %v1870 = vmul.f32 %v726, %v1803
    %v1871 = vmul.f32 %v728, %v1803
    %v1872 = vmul.f32 %v912, %v1803
    %v1873 = vmul.f32 %v914, %v1803
    %v1874 = vmul.f32 %v1098, %v1803
    %v1875 = vmul.f32 %v1100, %v1803
    %v1876 = vmul.f32 %v1267, %v1803
    %v1877 = vmul.f32 %v732, %v1808
    %v1878 = vmul.f32 %v734, %v1808
    %v1879 = vmul.f32 %v918, %v1808
    %v1880 = vmul.f32 %v920, %v1808
    %v1881 = vmul.f32 %v1104, %v1808
    %v1882 = vmul.f32 %v1106, %v1808
    %v1883 = vmul.f32 %v1272, %v1808
    %v1884 = vmul.f32 %v736, %v1813
    %v1885 = vmul.f32 %v738, %v1813
    %v1886 = vmul.f32 %v922, %v1813
    %v1887 = vmul.f32 %v924, %v1813
    %v1888 = vmul.f32 %v1108, %v1813
    %v1889 = vmul.f32 %v1110, %v1813
    %v1890 = vmul.f32 %v1275, %v1813
    %v1891 = vmul.f32 %v742, %v1818
    %v1892 = vmul.f32 %v744, %v1818
    %v1893 = vmul.f32 %v928, %v1818
    %v1894 = vmul.f32 %v930, %v1818
    %v1895 = vmul.f32 %v1114, %v1818
    %v1896 = vmul.f32 %v1116, %v1818
    %v1897 = vmul.f32 %v1280, %v1818
    %v1898 = vmul.f32 %v746, %v1823
    %v1899 = vmul.f32 %v748, %v1823
    %v1900 = vmul.f32 %v932, %v1823
    %v1901 = vmul.f32 %v934, %v1823
    %v1902 = vmul.f32 %v1118, %v1823
    %v1903 = vmul.f32 %v1120, %v1823
    %v1904 = vmul.f32 %v1283, %v1823
    %v1905 = vmul.f32 %v752, %v1828
    %v1906 = vmul.f32 %v754, %v1828
    %v1907 = vmul.f32 %v938, %v1828
    %v1908 = vmul.f32 %v940, %v1828
    %v1909 = vmul.f32 %v1124, %v1828
    %v1910 = vmul.f32 %v1126, %v1828
    %v1911 = vmul.f32 %v1288, %v1828
    %v1912 = vmul.f32 %v756, %v1833
    %v1913 = vmul.f32 %v758, %v1833
    %v1914 = vmul.f32 %v942, %v1833
    %v1915 = vmul.f32 %v944, %v1833
    %v1916 = vmul.f32 %v1128, %v1833
    %v1917 = vmul.f32 %v1130, %v1833
    %v1918 = vmul.f32 %v1291, %v1833
    %1920 = vset.pattern.permute.xlu0 1
    %1921 = vperm.xlu0 %1920, %v1763
    %v1922 = vpop.permute.xlu0 %1921
    %1925 = vset.pattern.permute.xlu0 1
    %1926 = vperm.xlu0 %1925, %v1764
    %v1927 = vpop.permute.xlu0 %1926
    %1930 = vset.pattern.permute.xlu0 1
    %1931 = vperm.xlu0 %1930, %v1765
    %v1932 = vpop.permute.xlu0 %1931
    %1935 = vset.pattern.permute.xlu0 1
    %1936 = vperm.xlu0 %1935, %v1766
    %v1937 = vpop.permute.xlu0 %1936
    %1940 = vset.pattern.permute.xlu0 1
    %1941 = vperm.xlu0 %1940, %v1767
    %v1942 = vpop.permute.xlu0 %1941
    %1945 = vset.pattern.permute.xlu0 1
    %1946 = vperm.xlu0 %1945, %v1768
    %v1947 = vpop.permute.xlu0 %1946
    %1950 = vset.pattern.permute.xlu0 1
    %1951 = vperm.xlu0 %1950, %v1769
    %v1952 = vpop.permute.xlu0 %1951
    %1955 = vset.pattern.permute.xlu0 1
    %1956 = vperm.xlu0 %1955, %v1770
    %v1957 = vpop.permute.xlu0 %1956
    %1960 = vset.pattern.permute.xlu0 1
    %1961 = vperm.xlu0 %1960, %v1771
    %v1962 = vpop.permute.xlu0 %1961
    %1965 = vset.pattern.permute.xlu0 1
    %1966 = vperm.xlu0 %1965, %v1772
    %v1967 = vpop.permute.xlu0 %1966
    %1970 = vset.pattern.permute.xlu0 1
    %1971 = vperm.xlu0 %1970, %v1773
    %v1972 = vpop.permute.xlu0 %1971
    %1975 = vset.pattern.permute.xlu0 1
    %1976 = vperm.xlu0 %1975, %v1774
    %v1977 = vpop.permute.xlu0 %1976
    %v1979 = vadd.f32 %v1835, %v1922
    %v1980 = vadd.f32 %v1836, %v1922
    %v1981 = vadd.f32 %v1837, %v1922
    %v1982 = vadd.f32 %v1838, %v1922
    %v1983 = vadd.f32 %v1839, %v1922
    %v1984 = vadd.f32 %v1840, %v1922
    %v1985 = vadd.f32 %v1841, %v1922
    %v1986 = vadd.f32 %v1842, %v1927
    %v1987 = vadd.f32 %v1843, %v1927
    %v1988 = vadd.f32 %v1844, %v1927
    %v1989 = vadd.f32 %v1845, %v1927
    %v1990 = vadd.f32 %v1846, %v1927
    %v1991 = vadd.f32 %v1847, %v1927
    %v1992 = vadd.f32 %v1848, %v1927
    %v1993 = vadd.f32 %v1849, %v1932
    %v1994 = vadd.f32 %v1850, %v1932
    %v1995 = vadd.f32 %v1851, %v1932
    %v1996 = vadd.f32 %v1852, %v1932
    %v1997 = vadd.f32 %v1853, %v1932
    %v1998 = vadd.f32 %v1854, %v1932
    %v1999 = vadd.f32 %v1855, %v1932
    %v2000 = vadd.f32 %v1856, %v1937
    %v2001 = vadd.f32 %v1857, %v1937
    %v2002 = vadd.f32 %v1858, %v1937
    %v2003 = vadd.f32 %v1859, %v1937
    %v2004 = vadd.f32 %v1860, %v1937
    %v2005 = vadd.f32 %v1861, %v1937
    %v2006 = vadd.f32 %v1862, %v1937
    %v2007 = vadd.f32 %v1863, %v1942
    %v2008 = vadd.f32 %v1864, %v1942
    %v2009 = vadd.f32 %v1865, %v1942
    %v2010 = vadd.f32 %v1866, %v1942
    %v2011 = vadd.f32 %v1867, %v1942
    %v2012 = vadd.f32 %v1868, %v1942
    %v2013 = vadd.f32 %v1869, %v1942
    %v2014 = vadd.f32 %v1870, %v1947
    %v2015 = vadd.f32 %v1871, %v1947
    %v2016 = vadd.f32 %v1872, %v1947
    %v2017 = vadd.f32 %v1873, %v1947
    %v2018 = vadd.f32 %v1874, %v1947
    %v2019 = vadd.f32 %v1875, %v1947
    %v2020 = vadd.f32 %v1876, %v1947
    %v2021 = vadd.f32 %v1877, %v1952
    %v2022 = vadd.f32 %v1878, %v1952
    %v2023 = vadd.f32 %v1879, %v1952
    %v2024 = vadd.f32 %v1880, %v1952
    %v2025 = vadd.f32 %v1881, %v1952
    %v2026 = vadd.f32 %v1882, %v1952
    %v2027 = vadd.f32 %v1883, %v1952
    %v2028 = vadd.f32 %v1884, %v1957
    %v2029 = vadd.f32 %v1885, %v1957
    %v2030 = vadd.f32 %v1886, %v1957
    %v2031 = vadd.f32 %v1887, %v1957
    %v2032 = vadd.f32 %v1888, %v1957
    %v2033 = vadd.f32 %v1889, %v1957
    %v2034 = vadd.f32 %v1890, %v1957
    %v2035 = vadd.f32 %v1891, %v1962
    %v2036 = vadd.f32 %v1892, %v1962
    %v2037 = vadd.f32 %v1893, %v1962
    %v2038 = vadd.f32 %v1894, %v1962
    %v2039 = vadd.f32 %v1895, %v1962
    %v2040 = vadd.f32 %v1896, %v1962
    %v2041 = vadd.f32 %v1897, %v1962
    %v2042 = vadd.f32 %v1898, %v1967
    %v2043 = vadd.f32 %v1899, %v1967
    %v2044 = vadd.f32 %v1900, %v1967
    %v2045 = vadd.f32 %v1901, %v1967
    %v2046 = vadd.f32 %v1902, %v1967
    %v2047 = vadd.f32 %v1903, %v1967
    %v2048 = vadd.f32 %v1904, %v1967
    %v2049 = vadd.f32 %v1905, %v1972
    %v2050 = vadd.f32 %v1906, %v1972
    %v2051 = vadd.f32 %v1907, %v1972
    %v2052 = vadd.f32 %v1908, %v1972
    %v2053 = vadd.f32 %v1909, %v1972
    %v2054 = vadd.f32 %v1910, %v1972
    %v2055 = vadd.f32 %v1911, %v1972
    %v2056 = vadd.f32 %v1912, %v1977
    %v2057 = vadd.f32 %v1913, %v1977
    %v2058 = vadd.f32 %v1914, %v1977
    %v2059 = vadd.f32 %v1915, %v1977
    %v2060 = vadd.f32 %v1916, %v1977
    %v2061 = vadd.f32 %v1917, %v1977
    %v2062 = vadd.f32 %v1918, %v1977
    %2063 = vst [vmem:[#allocation2] sm:$0xff] %v1979
    %2064 = vst [vmem:[#allocation2 + $0x8] sm:$0xff] %v1980
    %2065 = vst [vmem:[#allocation2 + $0x10] sm:$0xff] %v1981
    %2066 = vst [vmem:[#allocation2 + $0x18] sm:$0xff] %v1982
    %2067 = vst [vmem:[#allocation2 + $0x20] sm:$0xff] %v1983
    %2068 = vst [vmem:[#allocation2 + $0x28] sm:$0xff] %v1984
    %2069 = vst.msk [vmem:[#allocation2 + $0x30] sm:$0xff] %vm1299, %v1985
    %2070 = vst [vmem:[#allocation2 + $0x38] sm:$0xff] %v1986
    %2071 = vst [vmem:[#allocation2 + $0x40] sm:$0xff] %v1987
    %2072 = vst [vmem:[#allocation2 + $0x48] sm:$0xff] %v1988
    %2073 = vst [vmem:[#allocation2 + $0x50] sm:$0xff] %v1989
    %2074 = vst [vmem:[#allocation2 + $0x58] sm:$0xff] %v1990
    %2075 = vst [vmem:[#allocation2 + $0x60] sm:$0xff] %v1991
    %2076 = vst.msk [vmem:[#allocation2 + $0x68] sm:$0xff] %vm1299, %v1992
    %2077 = vst [vmem:[#allocation2 + $0x70] sm:$0xff] %v1993
    %2078 = vst [vmem:[#allocation2 + $0x78] sm:$0xff] %v1994
    %2079 = vst [vmem:[#allocation2 + $0x80] sm:$0xff] %v1995
    %2080 = vst [vmem:[#allocation2 + $0x88] sm:$0xff] %v1996
    %2081 = vst [vmem:[#allocation2 + $0x90] sm:$0xff] %v1997
    %2082 = vst [vmem:[#allocation2 + $0x98] sm:$0xff] %v1998
    %2083 = vst.msk [vmem:[#allocation2 + $0xa0] sm:$0xff] %vm1299, %v1999
    %2084 = vst [vmem:[#allocation2 + $0xa8] sm:$0xff] %v2000
    %2085 = vst [vmem:[#allocation2 + $0xb0] sm:$0xff] %v2001
    %2086 = vst [vmem:[#allocation2 + $0xb8] sm:$0xff] %v2002
    %2087 = vst [vmem:[#allocation2 + $0xc0] sm:$0xff] %v2003
    %2088 = vst [vmem:[#allocation2 + $0xc8] sm:$0xff] %v2004
    %2089 = vst [vmem:[#allocation2 + $0xd0] sm:$0xff] %v2005
    %2090 = vst.msk [vmem:[#allocation2 + $0xd8] sm:$0xff] %vm1299, %v2006
    %2091 = vst [vmem:[#allocation2 + $0xe0] sm:$0xff] %v2007
    %2092 = vst [vmem:[#allocation2 + $0xe8] sm:$0xff] %v2008
    %2093 = vst [vmem:[#allocation2 + $0xf0] sm:$0xff] %v2009
    %2094 = vst [vmem:[#allocation2 + $0xf8] sm:$0xff] %v2010
    %2095 = vst [vmem:[#allocation2 + $0x100] sm:$0xff] %v2011
    %2096 = vst [vmem:[#allocation2 + $0x108] sm:$0xff] %v2012
    %2097 = vst.msk [vmem:[#allocation2 + $0x110] sm:$0xff] %vm1299, %v2013
    %2098 = vst [vmem:[#allocation2 + $0x118] sm:$0xff] %v2014
    %2099 = vst [vmem:[#allocation2 + $0x120] sm:$0xff] %v2015
    %2100 = vst [vmem:[#allocation2 + $0x128] sm:$0xff] %v2016
    %2101 = vst [vmem:[#allocation2 + $0x130] sm:$0xff] %v2017
    %2102 = vst [vmem:[#allocation2 + $0x138] sm:$0xff] %v2018
    %2103 = vst [vmem:[#allocation2 + $0x140] sm:$0xff] %v2019
    %2104 = vst.msk [vmem:[#allocation2 + $0x148] sm:$0xff] %vm1299, %v2020
    %2105 = vst [vmem:[#allocation2 + $0x150] sm:$0xff] %v2021
    %2106 = vst [vmem:[#allocation2 + $0x158] sm:$0xff] %v2022
    %2107 = vst [vmem:[#allocation2 + $0x160] sm:$0xff] %v2023
    %2108 = vst [vmem:[#allocation2 + $0x168] sm:$0xff] %v2024
    %2109 = vst [vmem:[#allocation2 + $0x170] sm:$0xff] %v2025
    %2110 = vst [vmem:[#allocation2 + $0x178] sm:$0xff] %v2026
    %2111 = vst.msk [vmem:[#allocation2 + $0x180] sm:$0xff] %vm1299, %v2027
    %2112 = vst [vmem:[#allocation2 + $0x188] sm:$0xff] %v2028
    %2113 = vst [vmem:[#allocation2 + $0x190] sm:$0xff] %v2029
    %2114 = vst [vmem:[#allocation2 + $0x198] sm:$0xff] %v2030
    %2115 = vst [vmem:[#allocation2 + $0x1a0] sm:$0xff] %v2031
    %2116 = vst [vmem:[#allocation2 + $0x1a8] sm:$0xff] %v2032
    %2117 = vst [vmem:[#allocation2 + $0x1b0] sm:$0xff] %v2033
    %2118 = vst.msk [vmem:[#allocation2 + $0x1b8] sm:$0xff] %vm1299, %v2034
    %2119 = vst [vmem:[#allocation2 + $0x1c0] sm:$0xff] %v2035
    %2120 = vst [vmem:[#allocation2 + $0x1c8] sm:$0xff] %v2036
    %2121 = vst [vmem:[#allocation2 + $0x1d0] sm:$0xff] %v2037
    %2122 = vst [vmem:[#allocation2 + $0x1d8] sm:$0xff] %v2038
    %2123 = vst [vmem:[#allocation2 + $0x1e0] sm:$0xff] %v2039
    %2124 = vst [vmem:[#allocation2 + $0x1e8] sm:$0xff] %v2040
    %2125 = vst.msk [vmem:[#allocation2 + $0x1f0] sm:$0xff] %vm1299, %v2041
    %2126 = vst [vmem:[#allocation2 + $0x1f8] sm:$0xff] %v2042
    %2127 = vst [vmem:[#allocation2 + $0x200] sm:$0xff] %v2043
    %2128 = vst [vmem:[#allocation2 + $0x208] sm:$0xff] %v2044
    %2129 = vst [vmem:[#allocation2 + $0x210] sm:$0xff] %v2045
    %2130 = vst [vmem:[#allocation2 + $0x218] sm:$0xff] %v2046
    %2131 = vst [vmem:[#allocation2 + $0x220] sm:$0xff] %v2047
    %2132 = vst.msk [vmem:[#allocation2 + $0x228] sm:$0xff] %vm1299, %v2048
    %2133 = vst [vmem:[#allocation2 + $0x230] sm:$0xff] %v2049
    %2134 = vst [vmem:[#allocation2 + $0x238] sm:$0xff] %v2050
    %2135 = vst [vmem:[#allocation2 + $0x240] sm:$0xff] %v2051
    %2136 = vst [vmem:[#allocation2 + $0x248] sm:$0xff] %v2052
    %2137 = vst [vmem:[#allocation2 + $0x250] sm:$0xff] %v2053
    %2138 = vst [vmem:[#allocation2 + $0x258] sm:$0xff] %v2054
    %2139 = vst.msk [vmem:[#allocation2 + $0x260] sm:$0xff] %vm1299, %v2055
    %2140 = vst [vmem:[#allocation2 + $0x268] sm:$0xff] %v2056
    %2141 = vst [vmem:[#allocation2 + $0x270] sm:$0xff] %v2057
    %2142 = vst [vmem:[#allocation2 + $0x278] sm:$0xff] %v2058
    %2143 = vst [vmem:[#allocation2 + $0x280] sm:$0xff] %v2059
    %2144 = vst [vmem:[#allocation2 + $0x288] sm:$0xff] %v2060
    %2145 = vst [vmem:[#allocation2 + $0x290] sm:$0xff] %v2061
    %2146 = vst.msk [vmem:[#allocation2 + $0x298] sm:$0xff] %vm1299, %v2062
    // Predicated region
    $region14: #{tpu_custom_call.1} parent=1 // pred_check
      _
    $region15: #{tpu_custom_call.1} parent=1 // pred_check_branch
      %2148 = sbr.rel (0) target = $region17
    $region16: #{tpu_custom_call.1} parent=1 // pred_region
      %s2150 = ssub.s32 10752, 10752
      %2151 = vsyncadd [#allocation3], %s2150
      %s2152 = sshll.u32 [#allocation2], 4
      %s2153 = int_to_ptr.vmem [resolvable:$true] %s2152
      %2158 = dma.vmem_to_hbm [thread:$0]  %s2153, 10752, %s3, [#allocation3], 896, 896, 56
    $region17: #{tpu_custom_call.1} parent=1 // pred_fallthru
      _
    // Predicated region
    $region18: #{tpu_custom_call.1} parent=1 // pred_check
      _
    $region19: #{tpu_custom_call.1} parent=1 // pred_check_branch
      %2160 = sbr.rel (0) target = $region21
    $region20: #{tpu_custom_call.1} parent=1 // pred_region
      %2161 = dma.done [#allocation3], 10752
    $region21: #{tpu_custom_call.1} parent=1 // pred_fallthru
      _
    %2162 = vsyncpa [#allocation3], 1

</llo_original>
